<compile_context>
chip_gen: v7x
topology: tpu7x:2x2x1
jax: 0.10.0
libtpu: 0.0.40
codegen_flags: <defaults>
</compile_context>

<pallas_src>
import functools

import jax
import jax.numpy as jnp
from jax import lax
from jax.experimental import pallas as pl
from jax.experimental.pallas import tpu as pltpu


# ----------------------------- Pallas kernels -----------------------------


def _setup_kernel(x0_ref, w0_ref, b0_ref, x1_ref, w1_ref, b1_ref,
                  wvid_ref, ctrl_ref, wemb_ref, embf_ref,
                  fcg_ref, ctrlg_ref, embg_ref):
    """One-shot setup: fused FeatPool + loop-invariant gate projections.

      fc         = [relu(x0 @ W0^T + b0) | relu(x1 @ W1^T + b1)]    (N_img, 2H)
      fc_gates   = fc @ Wih_vid^T                                   (N_img, 4H)
      ctrl_gates = relu(ctrl_embed) @ Wih_emb^T                     (3B,   4H)
      emb_gates  = embed(seq[:, :T-1]) @ Wih_emb^T                  ((T-1)B,4H)
    """
    p0 = jnp.maximum(
        jnp.dot(x0_ref[...], w0_ref[...], preferred_element_type=jnp.float32)
        + b0_ref[...], 0.0)
    p1 = jnp.maximum(
        jnp.dot(x1_ref[...], w1_ref[...], preferred_element_type=jnp.float32)
        + b1_ref[...], 0.0)
    fc = jnp.concatenate([p0, p1], axis=1)                      # (N_img, 2H)
    fcg_ref[...] = jnp.dot(fc, wvid_ref[...],
                           preferred_element_type=jnp.float32
                           ).astype(fcg_ref.dtype)
    ctrlg_ref[...] = jnp.dot(ctrl_ref[...], wemb_ref[...],
                             preferred_element_type=jnp.float32
                             ).astype(ctrlg_ref.dtype)
    embg_ref[...] = jnp.dot(embf_ref[...], wemb_ref[...],
                            preferred_element_type=jnp.float32
                            ).astype(embg_ref.dtype)


def _decode_step_kernel(pre_ref, whh_ref, wlo_ref, blo_ref,
                        logp_ref, h_ref, c_ref):
    """One grid step = one decode timestep for all 3 branches (3B rows):

       gates  = pre_gates[t] + h @ Whh^T       (pre_gates holds x @ Wih^T)
       h', c' = LSTM cell (PyTorch i,f,g,o gate order, bias=False)
       logp   = log_softmax(h' @ Wlogit^T + b)

    Weights are VMEM-resident across the grid; h/c are carried in scratch.
    """
    H = h_ref.shape[-1]

    @pl.when(pl.program_id(0) == 0)
    def _init():
        h_ref[...] = jnp.zeros_like(h_ref)
        c_ref[...] = jnp.zeros_like(c_ref)

    gates = pre_ref[0] + jnp.dot(h_ref[...], whh_ref[...],
                                 preferred_element_type=jnp.float32)

    def _sigmoid(z):
        # 0.5*(1+tanh(z/2)): tanh runs on the EUP slot, avoiding the f32 VALU
        # Newton divide of 1/(1+exp(-z)) (perf-review item #5); exact math.
        return 0.5 * (jnp.tanh(0.5 * z) + 1.0)

    i_g = _sigmoid(gates[:, 0 * H:1 * H])
    f_g = _sigmoid(gates[:, 1 * H:2 * H])
    g_g = jnp.tanh(gates[:, 2 * H:3 * H])
    o_g = _sigmoid(gates[:, 3 * H:4 * H])

    c_new = f_g * c_ref[...] + i_g * g_g
    h_new = o_g * jnp.tanh(c_new)
    c_ref[...] = c_new
    h_ref[...] = h_new

    logits = jnp.dot(h_new, wlo_ref[...],
                     preferred_element_type=jnp.float32) + blo_ref[...]
    m = jnp.max(logits, axis=-1, keepdims=True)
    lse = jnp.log(jnp.sum(jnp.exp(logits - m), axis=-1, keepdims=True)) + m
    logp_ref[0] = (logits - lse).astype(logp_ref.dtype)


# ------------------------------ model forward ------------------------------


@functools.partial(jax.jit, static_argnames=("seq_per_img",))
def caption_forward(params, feats, seq, noun, seq_per_img):
    """Pallas-backed CaptionModel.forward (eval mode, model_type='concat')."""
    # NOTE: the 20-frame temporal-mean branch of FeatPool is skipped
    # (feature dims here are != 20); C == 1 so take [:, 0, :].
    x0 = feats[0][:, 0, :]
    x1 = feats[1][:, 0, :]
    n_img = x0.shape[0]

    H = params["w_hh_T"].shape[0]
    G = params["w_hh_T"].shape[1]            # 4H
    E = params["w_emb"].shape[1]
    V = params["w_logit_T"].shape[1]
    B = n_img * seq_per_img
    T = seq.shape[1]
    Tm1 = T - 1

    w_ih_emb_T = params["w_ih_T"][:E, :]     # (E, 4H)  token/control half
    w_ih_vid_T = params["w_ih_T"][E:, :]     # (2H, 4H) video-feature half

    # --- length_id buckets (mirrors the PyTorch expressions) + control ids ---
    length = jnp.sum((seq != 0).astype(jnp.int32), axis=-1)
    lid = ((length <= 5).astype(jnp.int32) * 1
           + ((length >= 6) & (length <= 9)).astype(jnp.int32) * 2
           + ((length >= 10) & (length <= 22)).astype(jnp.int32) * 3)
    ada = jnp.zeros((B,), jnp.int32)
    # control_embed = Dropout(ReLU(Embedding(.))); eval -> ReLU(gather).
    # TODO(synk): the original hard-codes a 512-wide control embedding; here it
    # is assumed equal to input_encoding_size so the add with embed(it) is valid.
    ctrl_cat = jax.nn.relu(
        params["w_ctrl"][jnp.concatenate([lid, ada, noun.astype(jnp.int32)])])

    # Token embeddings for every decode step, time-major: one batched gather
    # up front (fused under jit) instead of T-1 per-step gathers.
    emb_flat = params["w_emb"][seq[:, :Tm1].T.reshape(-1)]      # ((T-1)*B, E)

    # --- setup kernel: FeatPool + loop-invariant gate projections (1 launch) ---
    setup = pl.pallas_call(
        _setup_kernel,
        out_shape=(jax.ShapeDtypeStruct((n_img, G), jnp.float32),
                   jax.ShapeDtypeStruct((3 * B, G), jnp.float32),
                   jax.ShapeDtypeStruct((Tm1 * B, G), jnp.float32)),
        in_specs=[pl.BlockSpec(memory_space=pltpu.VMEM)] * 10,
        out_specs=(pl.BlockSpec(memory_space=pltpu.VMEM),) * 3,
    )
    fc_gates_img, ctrl_gates, emb_gates_flat = setup(
        x0, params["w_fp_T"][0], params["b_fp"][0].reshape(1, -1),
        x1, params["w_fp_T"][1], params["b_fp"][1].reshape(1, -1),
        w_ih_vid_T, ctrl_cat, w_ih_emb_T, emb_flat)

    # FeatExpander applied on the projected gates; branch order length/ada/noun.
    fc_gates = jnp.repeat(fc_gates_img, seq_per_img, axis=0)    # (B, 4H)
    base_gates = ctrl_gates + jnp.tile(fc_gates, (3, 1))        # (3B, 4H)
    # Everything of the LSTM input projection that does not depend on the
    # recurrent state, per step: (T-1, 3B, 4H), streamed one slab per grid iter.
    pre_gates = (base_gates[None, :, :]
                 + jnp.tile(emb_gates_flat.reshape(Tm1, B, G), (1, 3, 1)))

    # --- decode kernel: grid over time, resident weights, VMEM-carried state ---
    grid_spec = pltpu.PrefetchScalarGridSpec(
        num_scalar_prefetch=0,
        grid=(Tm1,),
        in_specs=[
            pl.BlockSpec((1, 3 * B, G), lambda t: (t, 0, 0)),   # pre_gates
            pl.BlockSpec((H, G), lambda t: (0, 0)),             # w_hh_T  (resident)
            pl.BlockSpec((H, V), lambda t: (0, 0)),             # w_logit (resident)
            pl.BlockSpec((1, V), lambda t: (0, 0)),             # b_logit (resident)
        ],
        out_specs=pl.BlockSpec((1, 3 * B, V), lambda t: (t, 0, 0)),
        scratch_shapes=[pltpu.VMEM((3 * B, H), jnp.float32),    # h (carried)
                        pltpu.VMEM((3 * B, H), jnp.float32)],   # c (carried)
    )
    decode = pl.pallas_call(
        _decode_step_kernel,
        out_shape=jax.ShapeDtypeStruct((Tm1, 3 * B, V), jnp.float32),
        grid_spec=grid_spec,
        compiler_params=pltpu.CompilerParams(
            dimension_semantics=("arbitrary",)),   # time axis carries h/c
    )
    logp_all = decode(pre_gates, params["w_hh_T"], params["w_logit_T"],
                      params["b_logit"].reshape(1, -1))          # (T-1, 3B, V)

    outs = jnp.transpose(logp_all, (1, 0, 2))                    # (3B, T-1, V)
    outputs, outputs2, outputs3 = outs[:B], outs[B:2 * B], outs[2 * B:]

    # sample_seq / sample_logprobs: at token_idx>=1 gather from the previous
    # step's logprobs -> one batched take_along_axis after the kernel.
    # TODO(synk): the data-dependent early exit `if it.sum() == 0: break` of
    # the PyTorch loop is not replicated in this static trace.
    sample_seq = seq[:, 1:Tm1]
    sample_logprobs = jnp.take_along_axis(
        outputs[:, :Tm1 - 1, :], sample_seq[..., None], axis=2)[..., 0]

    return outputs, outputs2, outputs3, sample_seq, sample_logprobs


# ---------------------------- pure-JAX reference ----------------------------


def _mm(a, b):
    return jnp.dot(a, b, precision=lax.Precision.HIGHEST)


def reference_forward(params, feats, seq, noun, seq_per_img):
    pooled = []
    for m, x in enumerate(feats):
        xm = x[:, 0, :]
        pooled.append(jnp.maximum(_mm(xm, params["w_fp_T"][m]) + params["b_fp"][m], 0.0))
    fc = jnp.concatenate(pooled, axis=1)
    fc_feats = jnp.repeat(fc, seq_per_img, axis=0)
    B = fc_feats.shape[0]
    T = seq.shape[1]
    H = params["w_hh_T"].shape[0]

    length = jnp.sum((seq != 0).astype(jnp.int32), axis=-1)
    lid = ((length <= 5).astype(jnp.int32) * 1
           + ((length >= 6) & (length <= 9)).astype(jnp.int32) * 2
           + ((length >= 10) & (length <= 22)).astype(jnp.int32) * 3)
    ada = jnp.zeros((B,), jnp.int32)
    e_len = jax.nn.relu(params["w_ctrl"][lid])
    e_ada = jax.nn.relu(params["w_ctrl"][ada])
    e_noun = jax.nn.relu(params["w_ctrl"][noun])

    def lstm_step(x, h, c):
        gates = _mm(x, params["w_ih_T"]) + _mm(h, params["w_hh_T"])
        i = jax.nn.sigmoid(gates[:, 0 * H:1 * H])
        f = jax.nn.sigmoid(gates[:, 1 * H:2 * H])
        g = jnp.tanh(gates[:, 2 * H:3 * H])
        o = jax.nn.sigmoid(gates[:, 3 * H:4 * H])
        c2 = f * c + i * g
        return o * jnp.tanh(c2), c2

    def head(h):
        logits = _mm(h, params["w_logit_T"]) + params["b_logit"]
        return jax.nn.log_softmax(logits, axis=-1)

    states = [(jnp.zeros((B, H), jnp.float32), jnp.zeros((B, H), jnp.float32))
              for _ in range(3)]
    outs = [[], [], []]
    sseq, slp = [], []
    for t in range(0, T - 1):
        it = seq[:, t]
        if t >= 1:
            sseq.append(it)
            slp.append(jnp.take_along_axis(outs[0][-1], it[:, None], axis=1)[:, 0])
        emb = params["w_emb"][it]
        xs = [jnp.concatenate([emb + e, fc_feats], axis=1)
              for e in (e_len, e_ada, e_noun)]
        for bi in range(3):
            h, c = lstm_step(xs[bi], states[bi][0], states[bi][1])
            states[bi] = (h, c)
            outs[bi].append(head(h))
    return (jnp.stack(outs[0], 1), jnp.stack(outs[1], 1), jnp.stack(outs[2], 1),
            jnp.stack(sseq, 1), jnp.stack(slp, 1))


# --------------------------------- params ----------------------------------


def init_params(key, feat_dims, vocab_size, enc_size, rnn_size):
    num_layers = 1
    fp_out = num_layers * rnn_size                      # FeatPool out_size
    video_enc = len(feat_dims) * fp_out                 # video_encoding_size
    lstm_in = enc_size + video_enc                      # 'concat' model input

    ks = jax.random.split(key, 12)

    def u(k, shape, scale=0.1):
        return jax.random.uniform(k, shape, jnp.float32, -scale, scale)

    return {
        # FeatPool Linear weights, stored pre-transposed (F, O)
        "w_fp_T": [u(ks[0], (feat_dims[0], fp_out)),
                   u(ks[1], (feat_dims[1], fp_out))],
        "b_fp": [u(ks[2], (fp_out,)), u(ks[3], (fp_out,))],
        # token embedding (V, E); control embedding (6, E)
        "w_emb": u(ks[4], (vocab_size, enc_size)),
        "w_ctrl": u(ks[5], (6, enc_size)),
        # LSTM (bias=False), stored pre-transposed: (IN, 4H), (H, 4H)
        "w_ih_T": u(ks[6], (lstm_in, 4 * rnn_size)),
        "w_hh_T": u(ks[7], (rnn_size, 4 * rnn_size)),
        # logit head, stored pre-transposed: (H, V)
        "w_logit_T": u(ks[8], (rnn_size, vocab_size)),
        "b_logit": jnp.zeros((vocab_size,), jnp.float32),
    }


# ----------------------------------- main -----------------------------------


if __name__ == "__main__":
    VOCAB = 128          # lane-dense vocab for the demo
    ENC = 128            # input_encoding_size (== control embedding width)
    RNN = 128            # rnn_size
    FEAT_DIMS = (96, 80)
    SEQ_PER_IMG = 2
    N_IMG = 2
    T = 8

    key = jax.random.PRNGKey(0)
    k_par, k_f1, k_f2, k_seq, k_noun = jax.random.split(key, 5)

    params = init_params(k_par, FEAT_DIMS, VOCAB, ENC, RNN)

    feats = [jax.random.normal(k_f1, (N_IMG, 1, FEAT_DIMS[0]), jnp.float32),
             jax.random.normal(k_f2, (N_IMG, 1, FEAT_DIMS[1]), jnp.float32)]

    B = N_IMG * SEQ_PER_IMG
    tokens = jax.random.randint(k_seq, (B, T), 1, VOCAB, dtype=jnp.int32)
    lengths = jnp.array([8, 6, 8, 4], jnp.int32)        # per-row caption lengths
    seq = jnp.where(jnp.arange(T)[None, :] < lengths[:, None], tokens, 0)
    noun = jax.random.randint(k_noun, (B,), 0, 6, dtype=jnp.int32)

    outs = caption_forward(params, feats, seq, noun, seq_per_img=SEQ_PER_IMG)
    outs = jax.block_until_ready(outs)

    refs = reference_forward(params, feats, seq, noun, SEQ_PER_IMG)
    names = ["outputs", "outputs2", "outputs3", "sample_seq", "sample_logprobs"]
    for name, a, b in zip(names, outs, refs):
        assert a.shape == b.shape, (name, a.shape, b.shape)
        if jnp.issubdtype(a.dtype, jnp.integer):
            assert jnp.array_equal(a, b), name
        else:
            err = jnp.max(jnp.abs(a - b))
            assert jnp.allclose(a, b, atol=2e-3, rtol=2e-3), (name, float(err))

    print("KERNEL_OK")
</pallas_src>

<mosaic_0001>
module attributes {stable_mosaic.version = 11 : i64} {
  func.func @_setup_kernel(%arg0: memref<2x96xf32, #tpu.memory_space<vmem>>, %arg1: memref<96x128xf32, #tpu.memory_space<vmem>>, %arg2: memref<1x128xf32, #tpu.memory_space<vmem>>, %arg3: memref<2x80xf32, #tpu.memory_space<vmem>>, %arg4: memref<80x128xf32, #tpu.memory_space<vmem>>, %arg5: memref<1x128xf32, #tpu.memory_space<vmem>>, %arg6: memref<256x512xf32, #tpu.memory_space<vmem>>, %arg7: memref<12x128xf32, #tpu.memory_space<vmem>>, %arg8: memref<128x512xf32, #tpu.memory_space<vmem>>, %arg9: memref<28x128xf32, #tpu.memory_space<vmem>>, %arg10: memref<2x512xf32, #tpu.memory_space<vmem>>, %arg11: memref<12x512xf32, #tpu.memory_space<vmem>>, %arg12: memref<28x512xf32, #tpu.memory_space<vmem>>) attributes {dimension_semantics = [], scalar_prefetch = 0 : i64, scratch_operands = 0 : i64, tpu.core_type = #tpu.core_type<tc>} {
    %c0 = arith.constant 0 : index
    %c0_0 = arith.constant 0 : index
    %0 = vector.load %arg0[%c0, %c0_0] : memref<2x96xf32, #tpu.memory_space<vmem>>, vector<2x96xf32>
    %c0_1 = arith.constant 0 : index
    %c0_2 = arith.constant 0 : index
    %1 = vector.load %arg1[%c0_1, %c0_2] : memref<96x128xf32, #tpu.memory_space<vmem>>, vector<96x128xf32>
    %cst = arith.constant dense<0.000000e+00> : vector<2x128xf32>
    %2 = tpu.matmul %0, %1, %cst {dimension_numbers = #tpu.dot_dimension_numbers<[1], [0], [0], [1], [0, 0, 1, 1], [], []>} : vector<2x96xf32>, vector<96x128xf32>, vector<2x128xf32> -> vector<2x128xf32>
    %c0_3 = arith.constant 0 : index
    %c0_4 = arith.constant 0 : index
    %3 = vector.load %arg2[%c0_3, %c0_4] : memref<1x128xf32, #tpu.memory_space<vmem>>, vector<1x128xf32>
    %4 = vector.broadcast %3 : vector<1x128xf32> to vector<2x128xf32>
    %5 = arith.addf %2, %4 : vector<2x128xf32>
    %cst_5 = arith.constant 0.000000e+00 : f32
    %6 = vector.broadcast %cst_5 : f32 to vector<2x128xf32>
    %7 = arith.maximumf %5, %6 : vector<2x128xf32>
    %c0_6 = arith.constant 0 : index
    %c0_7 = arith.constant 0 : index
    %8 = vector.load %arg3[%c0_6, %c0_7] : memref<2x80xf32, #tpu.memory_space<vmem>>, vector<2x80xf32>
    %c0_8 = arith.constant 0 : index
    %c0_9 = arith.constant 0 : index
    %9 = vector.load %arg4[%c0_8, %c0_9] : memref<80x128xf32, #tpu.memory_space<vmem>>, vector<80x128xf32>
    %cst_10 = arith.constant dense<0.000000e+00> : vector<2x128xf32>
    %10 = tpu.matmul %8, %9, %cst_10 {dimension_numbers = #tpu.dot_dimension_numbers<[1], [0], [0], [1], [0, 0, 1, 1], [], []>} : vector<2x80xf32>, vector<80x128xf32>, vector<2x128xf32> -> vector<2x128xf32>
    %c0_11 = arith.constant 0 : index
    %c0_12 = arith.constant 0 : index
    %11 = vector.load %arg5[%c0_11, %c0_12] : memref<1x128xf32, #tpu.memory_space<vmem>>, vector<1x128xf32>
    %12 = vector.broadcast %11 : vector<1x128xf32> to vector<2x128xf32>
    %13 = arith.addf %10, %12 : vector<2x128xf32>
    %cst_13 = arith.constant 0.000000e+00 : f32
    %14 = vector.broadcast %cst_13 : f32 to vector<2x128xf32>
    %15 = arith.maximumf %13, %14 : vector<2x128xf32>
    %16 = tpu.concatenate %7, %15 in 1 : vector<2x128xf32>, vector<2x128xf32> -> vector<2x256xf32>
    %c0_14 = arith.constant 0 : index
    %c0_15 = arith.constant 0 : index
    %17 = vector.load %arg6[%c0_14, %c0_15] : memref<256x512xf32, #tpu.memory_space<vmem>>, vector<256x512xf32>
    %cst_16 = arith.constant dense<0.000000e+00> : vector<2x512xf32>
    %18 = tpu.matmul %16, %17, %cst_16 {dimension_numbers = #tpu.dot_dimension_numbers<[1], [0], [0], [1], [0, 0, 1, 1], [], []>} : vector<2x256xf32>, vector<256x512xf32>, vector<2x512xf32> -> vector<2x512xf32>
    %c0_17 = arith.constant 0 : index
    %c0_18 = arith.constant 0 : index
    %19 = vector.load %arg10[%c0_17, %c0_18] : memref<2x512xf32, #tpu.memory_space<vmem>>, vector<2x512xf32>
    tpu.vector_store %arg10[%c0_17, %c0_18], %18 {strides = array<i32>} : memref<2x512xf32, #tpu.memory_space<vmem>>, vector<2x512xf32>,
    %c0_19 = arith.constant 0 : index
    %c0_20 = arith.constant 0 : index
    %20 = vector.load %arg7[%c0_19, %c0_20] : memref<12x128xf32, #tpu.memory_space<vmem>>, vector<12x128xf32>
    %c0_21 = arith.constant 0 : index
    %c0_22 = arith.constant 0 : index
    %21 = vector.load %arg8[%c0_21, %c0_22] : memref<128x512xf32, #tpu.memory_space<vmem>>, vector<128x512xf32>
    %cst_23 = arith.constant dense<0.000000e+00> : vector<12x512xf32>
    %22 = tpu.matmul %20, %21, %cst_23 {dimension_numbers = #tpu.dot_dimension_numbers<[1], [0], [0], [1], [0, 0, 1, 1], [], []>} : vector<12x128xf32>, vector<128x512xf32>, vector<12x512xf32> -> vector<12x512xf32>
    %c0_24 = arith.constant 0 : index
    %c0_25 = arith.constant 0 : index
    %23 = vector.load %arg11[%c0_24, %c0_25] : memref<12x512xf32, #tpu.memory_space<vmem>>, vector<12x512xf32>
    tpu.vector_store %arg11[%c0_24, %c0_25], %22 {strides = array<i32>} : memref<12x512xf32, #tpu.memory_space<vmem>>, vector<12x512xf32>,
    %c0_26 = arith.constant 0 : index
    %c0_27 = arith.constant 0 : index
    %24 = vector.load %arg9[%c0_26, %c0_27] : memref<28x128xf32, #tpu.memory_space<vmem>>, vector<28x128xf32>
    %c0_28 = arith.constant 0 : index
    %c0_29 = arith.constant 0 : index
    %25 = vector.load %arg8[%c0_28, %c0_29] : memref<128x512xf32, #tpu.memory_space<vmem>>, vector<128x512xf32>
    %cst_30 = arith.constant dense<0.000000e+00> : vector<28x512xf32>
    %26 = tpu.matmul %24, %25, %cst_30 {dimension_numbers = #tpu.dot_dimension_numbers<[1], [0], [0], [1], [0, 0, 1, 1], [], []>} : vector<28x128xf32>, vector<128x512xf32>, vector<28x512xf32> -> vector<28x512xf32>
    %c0_31 = arith.constant 0 : index
    %c0_32 = arith.constant 0 : index
    %27 = vector.load %arg12[%c0_31, %c0_32] : memref<28x512xf32, #tpu.memory_space<vmem>>, vector<28x512xf32>
    tpu.vector_store %arg12[%c0_31, %c0_32], %26 {strides = array<i32>} : memref<28x512xf32, #tpu.memory_space<vmem>>, vector<28x512xf32>,
    return
  }
}

module attributes {stable_mosaic.version = 11 : i64} {
  func.func @_decode_step_kernel(%arg0: i32, %arg1: memref<1x12x512xf32, #tpu.memory_space<vmem>>, %arg2: memref<128x512xf32, #tpu.memory_space<vmem>>, %arg3: memref<128x128xf32, #tpu.memory_space<vmem>>, %arg4: memref<1x128xf32, #tpu.memory_space<vmem>>, %arg5: memref<1x12x128xf32, #tpu.memory_space<vmem>>, %arg6: memref<12x128xf32, #tpu.memory_space<vmem>>, %arg7: memref<12x128xf32, #tpu.memory_space<vmem>>) attributes {dimension_semantics = [#tpu.dimension_semantics<arbitrary>], iteration_bounds = array<i64: 7>, scalar_prefetch = 0 : i64, scratch_operands = 2 : i64, tpu.core_type = #tpu.core_type<tc>, window_params = [{transform_indices = @transform_0, window_bounds = array<i64: 1, 12, 512>}, {pipeline_mode = #tpu.pipeline_mode<synchronous>, transform_indices = @transform_1, window_bounds = array<i64: 128, 512>}, {pipeline_mode = #tpu.pipeline_mode<synchronous>, transform_indices = @transform_2, window_bounds = array<i64: 128, 128>}, {pipeline_mode = #tpu.pipeline_mode<synchronous>, transform_indices = @transform_3, window_bounds = array<i64: 1, 128>}, {transform_indices = @transform_4, window_bounds = array<i64: 1, 12, 128>}]} {
    %c0_i32 = arith.constant 0 : i32
    %0 = arith.cmpi eq, %arg0, %c0_i32 : i32
    %1 = arith.extui %0 : i1 to i32
    %c0_i32_0 = arith.constant 0 : i32
    %2 = arith.cmpi ne, %1, %c0_i32_0 : i32
    scf.if %2 {
      %cst_32 = arith.constant 0.000000e+00 : f32
      %62 = vector.broadcast %cst_32 : f32 to vector<12x128xf32>
      %c0_33 = arith.constant 0 : index
      %c0_34 = arith.constant 0 : index
      %63 = vector.load %arg6[%c0_33, %c0_34] : memref<12x128xf32, #tpu.memory_space<vmem>>, vector<12x128xf32>
      tpu.vector_store %arg6[%c0_33, %c0_34], %62 {strides = array<i32>} : memref<12x128xf32, #tpu.memory_space<vmem>>, vector<12x128xf32>,
      %cst_35 = arith.constant 0.000000e+00 : f32
      %64 = vector.broadcast %cst_35 : f32 to vector<12x128xf32>
      %c0_36 = arith.constant 0 : index
      %c0_37 = arith.constant 0 : index
      %65 = vector.load %arg7[%c0_36, %c0_37] : memref<12x128xf32, #tpu.memory_space<vmem>>, vector<12x128xf32>
      tpu.vector_store %arg7[%c0_36, %c0_37], %64 {strides = array<i32>} : memref<12x128xf32, #tpu.memory_space<vmem>>, vector<12x128xf32>,
    } else {
    }
    %c0 = arith.constant 0 : index
    %c0_1 = arith.constant 0 : index
    %c0_2 = arith.constant 0 : index
    %3 = vector.load %arg1[%c0, %c0_1, %c0_2] : memref<1x12x512xf32, #tpu.memory_space<vmem>>, vector<1x12x512xf32>
    %4 = vector.shape_cast %3 : vector<1x12x512xf32> to vector<12x512xf32>
    %c0_3 = arith.constant 0 : index
    %c0_4 = arith.constant 0 : index
    %5 = vector.load %arg6[%c0_3, %c0_4] : memref<12x128xf32, #tpu.memory_space<vmem>>, vector<12x128xf32>
    %c0_5 = arith.constant 0 : index
    %c0_6 = arith.constant 0 : index
    %6 = vector.load %arg2[%c0_5, %c0_6] : memref<128x512xf32, #tpu.memory_space<vmem>>, vector<128x512xf32>
    %cst = arith.constant dense<0.000000e+00> : vector<12x512xf32>
    %7 = tpu.matmul %5, %6, %cst {dimension_numbers = #tpu.dot_dimension_numbers<[1], [0], [0], [1], [0, 0, 1, 1], [], []>} : vector<12x128xf32>, vector<128x512xf32>, vector<12x512xf32> -> vector<12x512xf32>
    %8 = arith.addf %4, %7 : vector<12x512xf32>
    %9 = vector.extract_strided_slice %8 {offsets = [0, 0], sizes = [12, 128], strides = [1, 1]} : vector<12x512xf32> to vector<12x128xf32>
    %cst_7 = arith.constant 5.000000e-01 : f32
    %10 = vector.broadcast %cst_7 : f32 to vector<12x128xf32>
    %11 = arith.mulf %10, %9 : vector<12x128xf32>
    %12 = math.tanh %11 : vector<12x128xf32>
    %cst_8 = arith.constant 1.000000e+00 : f32
    %13 = vector.broadcast %cst_8 : f32 to vector<12x128xf32>
    %14 = arith.addf %12, %13 : vector<12x128xf32>
    %cst_9 = arith.constant 5.000000e-01 : f32
    %15 = vector.broadcast %cst_9 : f32 to vector<12x128xf32>
    %16 = arith.mulf %15, %14 : vector<12x128xf32>
    %17 = vector.extract_strided_slice %8 {offsets = [0, 128], sizes = [12, 128], strides = [1, 1]} : vector<12x512xf32> to vector<12x128xf32>
    %cst_10 = arith.constant 5.000000e-01 : f32
    %18 = vector.broadcast %cst_10 : f32 to vector<12x128xf32>
    %19 = arith.mulf %18, %17 : vector<12x128xf32>
    %20 = math.tanh %19 : vector<12x128xf32>
    %cst_11 = arith.constant 1.000000e+00 : f32
    %21 = vector.broadcast %cst_11 : f32 to vector<12x128xf32>
    %22 = arith.addf %20, %21 : vector<12x128xf32>
    %cst_12 = arith.constant 5.000000e-01 : f32
    %23 = vector.broadcast %cst_12 : f32 to vector<12x128xf32>
    %24 = arith.mulf %23, %22 : vector<12x128xf32>
    %25 = vector.extract_strided_slice %8 {offsets = [0, 256], sizes = [12, 128], strides = [1, 1]} : vector<12x512xf32> to vector<12x128xf32>
    %26 = math.tanh %25 : vector<12x128xf32>
    %27 = vector.extract_strided_slice %8 {offsets = [0, 384], sizes = [12, 128], strides = [1, 1]} : vector<12x512xf32> to vector<12x128xf32>
    %cst_13 = arith.constant 5.000000e-01 : f32
    %28 = vector.broadcast %cst_13 : f32 to vector<12x128xf32>
    %29 = arith.mulf %28, %27 : vector<12x128xf32>
    %30 = math.tanh %29 : vector<12x128xf32>
    %cst_14 = arith.constant 1.000000e+00 : f32
    %31 = vector.broadcast %cst_14 : f32 to vector<12x128xf32>
    %32 = arith.addf %30, %31 : vector<12x128xf32>
    %cst_15 = arith.constant 5.000000e-01 : f32
    %33 = vector.broadcast %cst_15 : f32 to vector<12x128xf32>
    %34 = arith.mulf %33, %32 : vector<12x128xf32>
    %c0_16 = arith.constant 0 : index
    %c0_17 = arith.constant 0 : index
    %35 = vector.load %arg7[%c0_16, %c0_17] : memref<12x128xf32, #tpu.memory_space<vmem>>, vector<12x128xf32>
    %36 = arith.mulf %24, %35 : vector<12x128xf32>
    %37 = arith.mulf %16, %26 : vector<12x128xf32>
    %38 = arith.addf %36, %37 : vector<12x128xf32>
    %39 = math.tanh %38 : vector<12x128xf32>
    %40 = arith.mulf %34, %39 : vector<12x128xf32>
    %c0_18 = arith.constant 0 : index
    %c0_19 = arith.constant 0 : index
    %41 = vector.load %arg7[%c0_18, %c0_19] : memref<12x128xf32, #tpu.memory_space<vmem>>, vector<12x128xf32>
    tpu.vector_store %arg7[%c0_18, %c0_19], %38 {strides = array<i32>} : memref<12x128xf32, #tpu.memory_space<vmem>>, vector<12x128xf32>,
    %c0_20 = arith.constant 0 : index
    %c0_21 = arith.constant 0 : index
    %42 = vector.load %arg6[%c0_20, %c0_21] : memref<12x128xf32, #tpu.memory_space<vmem>>, vector<12x128xf32>
    tpu.vector_store %arg6[%c0_20, %c0_21], %40 {strides = array<i32>} : memref<12x128xf32, #tpu.memory_space<vmem>>, vector<12x128xf32>,
    %c0_22 = arith.constant 0 : index
    %c0_23 = arith.constant 0 : index
    %43 = vector.load %arg3[%c0_22, %c0_23] : memref<128x128xf32, #tpu.memory_space<vmem>>, vector<128x128xf32>
    %cst_24 = arith.constant dense<0.000000e+00> : vector<12x128xf32>
    %44 = tpu.matmul %40, %43, %cst_24 {dimension_numbers = #tpu.dot_dimension_numbers<[1], [0], [0], [1], [0, 0, 1, 1], [], []>} : vector<12x128xf32>, vector<128x128xf32>, vector<12x128xf32> -> vector<12x128xf32>
    %c0_25 = arith.constant 0 : index
    %c0_26 = arith.constant 0 : index
    %45 = vector.load %arg4[%c0_25, %c0_26] : memref<1x128xf32, #tpu.memory_space<vmem>>, vector<1x128xf32>
    %46 = vector.broadcast %45 : vector<1x128xf32> to vector<12x128xf32>
    %47 = arith.addf %44, %46 : vector<12x128xf32>
    %cst_27 = arith.constant dense<0xFF800000> : vector<12xf32>
    %48 = vector.multi_reduction <maximumf>, %47, %cst_27 [1] : vector<12x128xf32> to vector<12xf32>
    %49 = vector.shape_cast %48 : vector<12xf32> to vector<12x1xf32>
    %50 = vector.broadcast %49 : vector<12x1xf32> to vector<12x128xf32>
    %51 = arith.subf %47, %50 : vector<12x128xf32>
    %52 = math.exp %51 : vector<12x128xf32>
    %cst_28 = arith.constant dense<0.000000e+00> : vector<12xf32>
    %53 = vector.multi_reduction <add>, %52, %cst_28 [1] : vector<12x128xf32> to vector<12xf32>
    %54 = vector.shape_cast %53 : vector<12xf32> to vector<12x1xf32>
    %55 = math.log %54 : vector<12x1xf32>
    %56 = arith.addf %55, %49 : vector<12x1xf32>
    %57 = vector.broadcast %56 : vector<12x1xf32> to vector<12x128xf32>
    %58 = arith.subf %47, %57 : vector<12x128xf32>
    %c0_29 = arith.constant 0 : index
    %c0_30 = arith.constant 0 : index
    %c0_31 = arith.constant 0 : index
    %59 = vector.load %arg5[%c0_29, %c0_30, %c0_31] : memref<1x12x128xf32, #tpu.memory_space<vmem>>, vector<1x12x128xf32>
    %60 = vector.shape_cast %59 : vector<1x12x128xf32> to vector<12x128xf32>
    %61 = vector.shape_cast %58 : vector<12x128xf32> to vector<1x12x128xf32>
    tpu.vector_store %arg5[%c0_29, %c0_30, %c0_31], %61 {strides = array<i32>} : memref<1x12x128xf32, #tpu.memory_space<vmem>>, vector<1x12x128xf32>,
    return
  }
  func.func @transform_0(%arg0: i32) -> (i32, i32, i32) {
    %c0_i32 = arith.constant 0 : i32
    %c0_i32_0 = arith.constant 0 : i32
    %c0_i32_1 = arith.constant 0 : i32
    return %arg0, %c0_i32, %c0_i32_0 : i32, i32, i32
  }
  func.func @transform_1(%arg0: i32) -> (i32, i32) {
    %c0_i32 = arith.constant 0 : i32
    %c0_i32_0 = arith.constant 0 : i32
    %c0_i32_1 = arith.constant 0 : i32
    return %c0_i32, %c0_i32_0 : i32, i32
  }
  func.func @transform_2(%arg0: i32) -> (i32, i32) {
    %c0_i32 = arith.constant 0 : i32
    %c0_i32_0 = arith.constant 0 : i32
    %c0_i32_1 = arith.constant 0 : i32
    return %c0_i32, %c0_i32_0 : i32, i32
  }
  func.func @transform_3(%arg0: i32) -> (i32, i32) {
    %c0_i32 = arith.constant 0 : i32
    %c0_i32_0 = arith.constant 0 : i32
    %c0_i32_1 = arith.constant 0 : i32
    return %c0_i32, %c0_i32_0 : i32, i32
  }
  func.func @transform_4(%arg0: i32) -> (i32, i32, i32) {
    %c0_i32 = arith.constant 0 : i32
    %c0_i32_0 = arith.constant 0 : i32
    %c0_i32_1 = arith.constant 0 : i32
    return %arg0, %c0_i32, %c0_i32_0 : i32, i32, i32
  }
}

</mosaic_0001>

<llo_original>
// kernel: tile.11
$region0: #{tile.11}
  %s0 = inlined_call_operand.vmem [shape: f32[3,4,512], index: 0, kind: input, shape index: {}]
  %s1 = inlined_call_operand.vmem [shape: f32[12,512], index: 1, kind: output, shape index: {}]
  $region1: #{tile.11} parent=0
    #allocation0 [shape = 'u8[49152]{0}', space=vmem, size = 0xc000, scoped, tag = 'scoped mem for input reshape']
    %s3 = sshllo.u32 0, 4
    %s4 = smul.addr 4, 11
    %s5 = scalar_lea.vmem %s0, %s4
    %v6 = vld [vmem:[%s5] sm:%s3]
    %s7 = scalar_lea.vmem [#allocation0], 88
    %8 = vst [vmem:[%s7] sm:%s3] %v6
    %s9 = smul.addr 4, 10
    %s10 = scalar_lea.vmem %s0, %s9
    %v11 = vld [vmem:[%s10] sm:%s3]
    %s12 = scalar_lea.vmem [#allocation0], 80
    %13 = vst [vmem:[%s12] sm:%s3] %v11
    %s14 = smul.addr 4, 9
    %s15 = scalar_lea.vmem %s0, %s14
    %v16 = vld [vmem:[%s15] sm:%s3]
    %s17 = scalar_lea.vmem [#allocation0], 72
    %18 = vst [vmem:[%s17] sm:%s3] %v16
    %s19 = smul.addr 4, 8
    %s20 = scalar_lea.vmem %s0, %s19
    %v21 = vld [vmem:[%s20] sm:%s3]
    %s22 = scalar_lea.vmem [#allocation0], 64
    %23 = vst [vmem:[%s22] sm:%s3] %v21
    %s24 = smul.addr 4, 7
    %s25 = scalar_lea.vmem %s0, %s24
    %v26 = vld [vmem:[%s25] sm:%s3]
    %s27 = scalar_lea.vmem [#allocation0], 56
    %28 = vst [vmem:[%s27] sm:%s3] %v26
    %s29 = smul.addr 4, 6
    %s30 = scalar_lea.vmem %s0, %s29
    %v31 = vld [vmem:[%s30] sm:%s3]
    %s32 = scalar_lea.vmem [#allocation0], 48
    %33 = vst [vmem:[%s32] sm:%s3] %v31
    %s34 = smul.addr 4, 5
    %s35 = scalar_lea.vmem %s0, %s34
    %v36 = vld [vmem:[%s35] sm:%s3]
    %s37 = scalar_lea.vmem [#allocation0], 40
    %38 = vst [vmem:[%s37] sm:%s3] %v36
    %s39 = smul.addr 4, 4
    %s40 = scalar_lea.vmem %s0, %s39
    %v41 = vld [vmem:[%s40] sm:%s3]
    %s42 = scalar_lea.vmem [#allocation0], 32
    %43 = vst [vmem:[%s42] sm:%s3] %v41
    %s44 = smul.addr 4, 3
    %s45 = scalar_lea.vmem %s0, %s44
    %v46 = vld [vmem:[%s45] sm:%s3]
    %s47 = scalar_lea.vmem [#allocation0], 24
    %48 = vst [vmem:[%s47] sm:%s3] %v46
    %s49 = smul.addr 4, 2
    %s50 = scalar_lea.vmem %s0, %s49
    %v51 = vld [vmem:[%s50] sm:%s3]
    %s52 = scalar_lea.vmem [#allocation0], 16
    %53 = vst [vmem:[%s52] sm:%s3] %v51
    %s54 = scalar_lea.vmem %s0, 4
    %v55 = vld [vmem:[%s54] sm:%s3]
    %s56 = scalar_lea.vmem [#allocation0], 8
    %57 = vst [vmem:[%s56] sm:%s3] %v55
    %v58 = vld [vmem:[%s0] sm:%s3]
    %59 = vst [vmem:[#allocation0] sm:%s3] %v58
    %v60 = vld [vmem:[#allocation0] sm:$0xf]
    %61 = vst [vmem:[%s1] sm:$0xf] %v60
    %s62 = scalar_lea.vmem [#allocation0], 8
    %v63 = vld [vmem:[%s62] sm:$0xf]
    %s64 = scalar_lea.vmem %s1, 8
    %65 = vst [vmem:[%s64] sm:$0xf] %v63
    %s66 = scalar_lea.vmem [#allocation0], 16
    %v67 = vld [vmem:[%s66] sm:$0xf]
    %s68 = scalar_lea.vmem %s1, 16
    %69 = vst [vmem:[%s68] sm:$0xf] %v67
    %s70 = scalar_lea.vmem [#allocation0], 24
    %v71 = vld [vmem:[%s70] sm:$0xf]
    %s72 = scalar_lea.vmem %s1, 24
    %73 = vst [vmem:[%s72] sm:$0xf] %v71
    %s74 = scalar_lea.vmem [#allocation0], 32
    %v75 = vld [vmem:[%s74] sm:$0xf]
    %s76 = scalar_lea.vmem %s1, 4
    %77 = vst [vmem:[%s76] sm:$0xf] %v75
    %s78 = scalar_lea.vmem [#allocation0], 40
    %v79 = vld [vmem:[%s78] sm:$0xf]
    %s80 = scalar_lea.vmem %s1, 12
    %81 = vst [vmem:[%s80] sm:$0xf] %v79
    %s82 = scalar_lea.vmem [#allocation0], 48
    %v83 = vld [vmem:[%s82] sm:$0xf]
    %s84 = scalar_lea.vmem %s1, 20
    %85 = vst [vmem:[%s84] sm:$0xf] %v83
    %s86 = scalar_lea.vmem [#allocation0], 56
    %v87 = vld [vmem:[%s86] sm:$0xf]
    %s88 = scalar_lea.vmem %s1, 28
    %89 = vst [vmem:[%s88] sm:$0xf] %v87
    %s90 = scalar_lea.vmem [#allocation0], 64
    %v91 = vld [vmem:[%s90] sm:$0xf]
    %s92 = scalar_lea.vmem %s1, 32
    %93 = vst [vmem:[%s92] sm:$0xf] %v91
    %s94 = scalar_lea.vmem [#allocation0], 72
    %v95 = vld [vmem:[%s94] sm:$0xf]
    %s96 = scalar_lea.vmem %s1, 40
    %97 = vst [vmem:[%s96] sm:$0xf] %v95
    %s98 = scalar_lea.vmem [#allocation0], 80
    %v99 = vld [vmem:[%s98] sm:$0xf]
    %s100 = scalar_lea.vmem %s1, 48
    %101 = vst [vmem:[%s100] sm:$0xf] %v99
    %s102 = scalar_lea.vmem [#allocation0], 88
    %v103 = vld [vmem:[%s102] sm:$0xf]
    %s104 = scalar_lea.vmem %s1, 56
    %105 = vst [vmem:[%s104] sm:$0xf] %v103

// kernel: caption_forward.2
$region0: #{caption_forward.2}
  #allocation0 [shape = 'u32[]', space=smem, size = 0x4, offset = 0x4, fixed_abs, tag = 'smem constant byte address 0x4 - core index']
  #allocation1 [shape = 'u32[144,128]{1,0:T(1,128)}', space=vmem, size = 0x12000, scoped, tag = 'internal scratch']
  %s0 = inlined_call_operand.vmem [shape: f32[2,96], index: 0, kind: input, shape index: {}]
  %s1 = inlined_call_operand.vmem [shape: f32[96,128], index: 1, kind: input, shape index: {}]
  %s2 = inlined_call_operand.vmem [shape: f32[1,128], index: 2, kind: input, shape index: {}]
  %s3 = inlined_call_operand.vmem [shape: f32[2,80], index: 3, kind: input, shape index: {}]
  %s4 = inlined_call_operand.vmem [shape: f32[80,128], index: 4, kind: input, shape index: {}]
  %s5 = inlined_call_operand.vmem [shape: f32[1,128], index: 5, kind: input, shape index: {}]
  %s6 = inlined_call_operand.vmem [shape: f32[256,512], index: 6, kind: input, shape index: {}]
  %s7 = inlined_call_operand.vmem [shape: f32[12,128], index: 7, kind: input, shape index: {}]
  %s8 = inlined_call_operand.vmem [shape: f32[128,512], index: 8, kind: input, shape index: {}]
  %s9 = inlined_call_operand.vmem [shape: f32[28,128], index: 9, kind: input, shape index: {}]
  %s10 = inlined_call_operand.vmem [shape: f32[2,512], index: 10, kind: output, shape index: {0}]
  %s11 = inlined_call_operand.vmem [shape: f32[12,512], index: 11, kind: output, shape index: {1}]
  %s12 = inlined_call_operand.vmem [shape: f32[28,512], index: 12, kind: output, shape index: {2}]
  %13 = xla_tuple %s10, %s11, %s12
  %s14 = sld [smem:[#allocation0]]
  $region66: #{caption_forward.2} parent=0
    _
  %s16 = ssub.s32 1, %s14
  %s17 = scalar_select 0, %s16, %s14
  // Predicated region
  $region2: #{caption_forward.2} parent=0 // pred_check
    _
  $region3: #{caption_forward.2} parent=0 // pred_check_branch
    %19 = sbr.rel (0) target = $region5
  $region4: #{caption_forward.2} parent=0 // pred_region
    _
  $region5: #{caption_forward.2} parent=0 // pred_fallthru
    _
  // Predicated region
  $region6: #{caption_forward.2} parent=0 // pred_check
    _
  $region7: #{caption_forward.2} parent=0 // pred_check_branch
    %21 = sbr.rel (0) target = $region9
  $region8: #{caption_forward.2} parent=0 // pred_region
    _
  $region9: #{caption_forward.2} parent=0 // pred_fallthru
    _
  // Predicated region
  $region10: #{caption_forward.2} parent=0 // pred_check
    _
  $region11: #{caption_forward.2} parent=0 // pred_check_branch
    %23 = sbr.rel (0) target = $region13
  $region12: #{caption_forward.2} parent=0 // pred_region
    _
  $region13: #{caption_forward.2} parent=0 // pred_fallthru
    _
  // Predicated region
  $region14: #{caption_forward.2} parent=0 // pred_check
    _
  $region15: #{caption_forward.2} parent=0 // pred_check_branch
    %25 = sbr.rel (0) target = $region17
  $region16: #{caption_forward.2} parent=0 // pred_region
    _
  $region17: #{caption_forward.2} parent=0 // pred_fallthru
    _
  // Predicated region
  $region18: #{caption_forward.2} parent=0 // pred_check
    _
  $region19: #{caption_forward.2} parent=0 // pred_check_branch
    %27 = sbr.rel (0) target = $region21
  $region20: #{caption_forward.2} parent=0 // pred_region
    _
  $region21: #{caption_forward.2} parent=0 // pred_fallthru
    _
  // Predicated region
  $region22: #{caption_forward.2} parent=0 // pred_check
    _
  $region23: #{caption_forward.2} parent=0 // pred_check_branch
    %29 = sbr.rel (0) target = $region25
  $region24: #{caption_forward.2} parent=0 // pred_region
    _
  $region25: #{caption_forward.2} parent=0 // pred_fallthru
    _
  // Predicated region
  $region26: #{caption_forward.2} parent=0 // pred_check
    _
  $region27: #{caption_forward.2} parent=0 // pred_check_branch
    %31 = sbr.rel (0) target = $region29
  $region28: #{caption_forward.2} parent=0 // pred_region
    _
  $region29: #{caption_forward.2} parent=0 // pred_fallthru
    _
  // Predicated region
  $region30: #{caption_forward.2} parent=0 // pred_check
    _
  $region31: #{caption_forward.2} parent=0 // pred_check_branch
    %33 = sbr.rel (0) target = $region33
  $region32: #{caption_forward.2} parent=0 // pred_region
    _
  $region33: #{caption_forward.2} parent=0 // pred_fallthru
    _
  // Predicated region
  $region34: #{caption_forward.2} parent=0 // pred_check
    _
  $region35: #{caption_forward.2} parent=0 // pred_check_branch
    %35 = sbr.rel (0) target = $region37
  $region36: #{caption_forward.2} parent=0 // pred_region
    _
  $region37: #{caption_forward.2} parent=0 // pred_fallthru
    _
  // Predicated region
  $region38: #{caption_forward.2} parent=0 // pred_check
    _
  $region39: #{caption_forward.2} parent=0 // pred_check_branch
    %37 = sbr.rel (0) target = $region41
  $region40: #{caption_forward.2} parent=0 // pred_region
    _
  $region41: #{caption_forward.2} parent=0 // pred_fallthru
    _
  %v38 = vld [vmem:[%s0] sm:$0x3]
  %v39 = vld [vmem:[%s1] sm:$0xff]
  %v40 = vld [vmem:[%s1 + $0x8] sm:$0xff]
  %v41 = vld [vmem:[%s1 + $0x10] sm:$0xff]
  %v42 = vld [vmem:[%s1 + $0x18] sm:$0xff]
  %v43 = vld [vmem:[%s1 + $0x20] sm:$0xff]
  %v44 = vld [vmem:[%s1 + $0x28] sm:$0xff]
  %v45 = vld [vmem:[%s1 + $0x30] sm:$0xff]
  %v46 = vld [vmem:[%s1 + $0x38] sm:$0xff]
  %v47 = vld [vmem:[%s1 + $0x40] sm:$0xff]
  %v48 = vld [vmem:[%s1 + $0x48] sm:$0xff]
  %v49 = vld [vmem:[%s1 + $0x50] sm:$0xff]
  %v50 = vld [vmem:[%s1 + $0x58] sm:$0xff]
  %v51 = vld [vmem:[%s2] sm:$0x1]
  %v53 = vlaneseq
  %v54 = vshrl.u32 %v53, 7
  %v55 = vsub.s32 0, %v54
  %v56 = vrot.slane %v51, %v55
  %vm58 = vcmask 785408
  %v60 = vsel %vm58, %v38, 0
  %62 = vmatprep.subr.mxu0 0.0
  %63 = vmatpush1.msra.mxu0 %v39
  %64 = vmatprep.subr.mxu0 0.0
  %65 = vmatpush1.msra.mxu0 %v40
  %66 = vmatprep.subr.mxu0 0.0
  %67 = vmatpush1.msra.mxu0 %v41
  %68 = vmatprep.subr.mxu0 0.0
  %69 = vmatpush1.msra.mxu0 %v42
  %70 = vmatprep.subr.mxu0 0.0
  %71 = vmatpush1.msra.mxu0 %v43
  %72 = vmatprep.subr.mxu0 0.0
  %73 = vmatpush1.msra.mxu0 %v44
  %74 = vmatprep.subr.mxu0 0.0
  %75 = vmatpush1.msra.mxu0 %v45
  %76 = vmatprep.subr.mxu0 0.0
  %77 = vmatpush1.msra.mxu0 %v46
  %78 = vmatprep.subr.mxu0 0.0
  %79 = vmatpush1.msra.mxu0 %v47
  %80 = vmatprep.subr.mxu0 0.0
  %81 = vmatpush1.msra.mxu0 %v48
  %82 = vmatprep.subr.mxu0 0.0
  %83 = vmatpush1.msra.mxu0 %v49
  %84 = vmatprep.subr.mxu0 0.0
  %85 = vmatpush1.msra.mxu0 %v50
  %86 = vmatprep.subr.mxu0 0.0
  %87 = vmatpush1.msra.mxu0 0.0
  %88 = vmatprep.subr.mxu0 0.0
  %89 = vmatpush1.msra.mxu0 0.0
  %90 = vmatprep.subr.mxu0 0.0
  %91 = vmatpush1.msra.mxu0 0.0
  %92 = vmatprep.subr.mxu0 0.0
  %93 = vmatpush1.msra.mxu0 0.0
  %94 = vmatprep.subr.mxu0 0.0
  %95 = vmatpush1.msra.mxu0 0.0
  %96 = vmatprep.subr.mxu0 0.0
  %97 = vmatpush1.msra.mxu0 0.0
  %98 = vmatprep.subr.mxu0 0.0
  %99 = vmatpush1.msra.mxu0 0.0
  %100 = vmatprep.subr.mxu0 0.0
  %101 = vmatpush1.msra.mxu0 0.0
  %102 = vmatprep.subr.mxu0 0.0
  %103 = vmatpush1.msra.mxu0 0.0
  %104 = vmatprep.subr.mxu0 0.0
  %105 = vmatpush1.msra.mxu0 0.0
  %106 = vmatprep.subr.mxu0 0.0
  %107 = vmatpush1.msra.mxu0 0.0
  %108 = vmatprep.subr.mxu0 0.0
  %109 = vmatpush1.msra.mxu0 0.0
  %110 = vmatprep.subr.mxu0 0.0
  %111 = vmatpush1.msra.mxu0 0.0
  %112 = vmatprep.subr.mxu0 0.0
  %113 = vmatpush1.msra.mxu0 0.0
  %114 = vmatprep.subr.mxu0 0.0
  %115 = vmatpush1.msra.mxu0 0.0
  %116 = vmatprep.subr.mxu0 0.0
  %117 = vmatpush1.msra.mxu0 0.0
  %118 = vmatprep.subr.mxu0 0.0
  %119 = vmatpush1.msra.mxu0 0.0
  %120 = vmatprep.subr.mxu0 0.0
  %121 = vmatpush1.msra.mxu0 0.0
  %122 = vmatprep.subr.mxu0 0.0
  %123 = vmatpush1.msra.mxu0 0.0
  %124 = vmatprep.subr.mxu0 0.0
  %125 = vmatpush1.msra.mxu0 0.0
  %126 = vmatprep.mubr.f32.mxu0 0.0
  %127 = vmatmul.mubr.f32.gmra.mrb[0].mxu0 %v60
  %v128 = vpop.f32.mrb[0].mxu0
  %v129 = vadd.f32 %v56, %v128
  %v130 = vpop.f32.mrb[0].mxu0
  %131 = vdwg.mxu0
  %v132 = vmax.f32 %v129, 0.0
  %v133 = vld [vmem:[%s3] sm:$0x3]
  %v134 = vld [vmem:[%s4] sm:$0xff]
  %v135 = vld [vmem:[%s4 + $0x8] sm:$0xff]
  %v136 = vld [vmem:[%s4 + $0x10] sm:$0xff]
  %v137 = vld [vmem:[%s4 + $0x18] sm:$0xff]
  %v138 = vld [vmem:[%s4 + $0x20] sm:$0xff]
  %v139 = vld [vmem:[%s4 + $0x28] sm:$0xff]
  %v140 = vld [vmem:[%s4 + $0x30] sm:$0xff]
  %v141 = vld [vmem:[%s4 + $0x38] sm:$0xff]
  %v142 = vld [vmem:[%s4 + $0x40] sm:$0xff]
  %v143 = vld [vmem:[%s4 + $0x48] sm:$0xff]
  %v144 = vld [vmem:[%s5] sm:$0x1]
  %v146 = vlaneseq
  %v147 = vshrl.u32 %v146, 7
  %v148 = vsub.s32 0, %v147
  %v149 = vrot.slane %v144, %v148
  %vm151 = vcmask 654336
  %v153 = vsel %vm151, %v133, 0
  %155 = vmatprep.subr.mxu0 0.0
  %156 = vmatpush1.msra.mxu0 %v134
  %157 = vmatprep.subr.mxu0 0.0
  %158 = vmatpush1.msra.mxu0 %v135
  %159 = vmatprep.subr.mxu0 0.0
  %160 = vmatpush1.msra.mxu0 %v136
  %161 = vmatprep.subr.mxu0 0.0
  %162 = vmatpush1.msra.mxu0 %v137
  %163 = vmatprep.subr.mxu0 0.0
  %164 = vmatpush1.msra.mxu0 %v138
  %165 = vmatprep.subr.mxu0 0.0
  %166 = vmatpush1.msra.mxu0 %v139
  %167 = vmatprep.subr.mxu0 0.0
  %168 = vmatpush1.msra.mxu0 %v140
  %169 = vmatprep.subr.mxu0 0.0
  %170 = vmatpush1.msra.mxu0 %v141
  %171 = vmatprep.subr.mxu0 0.0
  %172 = vmatpush1.msra.mxu0 %v142
  %173 = vmatprep.subr.mxu0 0.0
  %174 = vmatpush1.msra.mxu0 %v143
  %175 = vmatprep.subr.mxu0 0.0
  %176 = vmatpush1.msra.mxu0 0.0
  %177 = vmatprep.subr.mxu0 0.0
  %178 = vmatpush1.msra.mxu0 0.0
  %179 = vmatprep.subr.mxu0 0.0
  %180 = vmatpush1.msra.mxu0 0.0
  %181 = vmatprep.subr.mxu0 0.0
  %182 = vmatpush1.msra.mxu0 0.0
  %183 = vmatprep.subr.mxu0 0.0
  %184 = vmatpush1.msra.mxu0 0.0
  %185 = vmatprep.subr.mxu0 0.0
  %186 = vmatpush1.msra.mxu0 0.0
  %187 = vmatprep.subr.mxu0 0.0
  %188 = vmatpush1.msra.mxu0 0.0
  %189 = vmatprep.subr.mxu0 0.0
  %190 = vmatpush1.msra.mxu0 0.0
  %191 = vmatprep.subr.mxu0 0.0
  %192 = vmatpush1.msra.mxu0 0.0
  %193 = vmatprep.subr.mxu0 0.0
  %194 = vmatpush1.msra.mxu0 0.0
  %195 = vmatprep.subr.mxu0 0.0
  %196 = vmatpush1.msra.mxu0 0.0
  %197 = vmatprep.subr.mxu0 0.0
  %198 = vmatpush1.msra.mxu0 0.0
  %199 = vmatprep.subr.mxu0 0.0
  %200 = vmatpush1.msra.mxu0 0.0
  %201 = vmatprep.subr.mxu0 0.0
  %202 = vmatpush1.msra.mxu0 0.0
  %203 = vmatprep.subr.mxu0 0.0
  %204 = vmatpush1.msra.mxu0 0.0
  %205 = vmatprep.subr.mxu0 0.0
  %206 = vmatpush1.msra.mxu0 0.0
  %207 = vmatprep.subr.mxu0 0.0
  %208 = vmatpush1.msra.mxu0 0.0
  %209 = vmatprep.subr.mxu0 0.0
  %210 = vmatpush1.msra.mxu0 0.0
  %211 = vmatprep.subr.mxu0 0.0
  %212 = vmatpush1.msra.mxu0 0.0
  %213 = vmatprep.subr.mxu0 0.0
  %214 = vmatpush1.msra.mxu0 0.0
  %215 = vmatprep.subr.mxu0 0.0
  %216 = vmatpush1.msra.mxu0 0.0
  %217 = vmatprep.subr.mxu0 0.0
  %218 = vmatpush1.msra.mxu0 0.0
  %219 = vmatprep.mubr.f32.mxu0 0.0
  %220 = vmatmul.mubr.f32.gmra.mrb[0].mxu0 %v153
  %v221 = vpop.f32.mrb[0].mxu0
  %v222 = vadd.f32 %v149, %v221
  %v223 = vpop.f32.mrb[0].mxu0
  %224 = vdwg.mxu0
  %v225 = vmax.f32 %v222, 0.0
  %v226 = vld [vmem:[%s6] sm:$0xff]
  %v227 = vld [vmem:[%s6 + $0x8] sm:$0xff]
  %v228 = vld [vmem:[%s6 + $0x10] sm:$0xff]
  %v229 = vld [vmem:[%s6 + $0x18] sm:$0xff]
  %v230 = vld [vmem:[%s6 + $0x20] sm:$0xff]
  %v231 = vld [vmem:[%s6 + $0x28] sm:$0xff]
  %v232 = vld [vmem:[%s6 + $0x30] sm:$0xff]
  %v233 = vld [vmem:[%s6 + $0x38] sm:$0xff]
  %v234 = vld [vmem:[%s6 + $0x40] sm:$0xff]
  %v235 = vld [vmem:[%s6 + $0x48] sm:$0xff]
  %v236 = vld [vmem:[%s6 + $0x50] sm:$0xff]
  %v237 = vld [vmem:[%s6 + $0x58] sm:$0xff]
  %v238 = vld [vmem:[%s6 + $0x60] sm:$0xff]
  %v239 = vld [vmem:[%s6 + $0x68] sm:$0xff]
  %v240 = vld [vmem:[%s6 + $0x70] sm:$0xff]
  %v241 = vld [vmem:[%s6 + $0x78] sm:$0xff]
  %v242 = vld [vmem:[%s6 + $0x80] sm:$0xff]
  %v243 = vld [vmem:[%s6 + $0x88] sm:$0xff]
  %v244 = vld [vmem:[%s6 + $0x90] sm:$0xff]
  %v245 = vld [vmem:[%s6 + $0x98] sm:$0xff]
  %v246 = vld [vmem:[%s6 + $0xa0] sm:$0xff]
  %v247 = vld [vmem:[%s6 + $0xa8] sm:$0xff]
  %v248 = vld [vmem:[%s6 + $0xb0] sm:$0xff]
  %v249 = vld [vmem:[%s6 + $0xb8] sm:$0xff]
  %v250 = vld [vmem:[%s6 + $0xc0] sm:$0xff]
  %v251 = vld [vmem:[%s6 + $0xc8] sm:$0xff]
  %v252 = vld [vmem:[%s6 + $0xd0] sm:$0xff]
  %v253 = vld [vmem:[%s6 + $0xd8] sm:$0xff]
  %v254 = vld [vmem:[%s6 + $0xe0] sm:$0xff]
  %v255 = vld [vmem:[%s6 + $0xe8] sm:$0xff]
  %v256 = vld [vmem:[%s6 + $0xf0] sm:$0xff]
  %v257 = vld [vmem:[%s6 + $0xf8] sm:$0xff]
  %v258 = vld [vmem:[%s6 + $0x100] sm:$0xff]
  %v259 = vld [vmem:[%s6 + $0x108] sm:$0xff]
  %v260 = vld [vmem:[%s6 + $0x110] sm:$0xff]
  %v261 = vld [vmem:[%s6 + $0x118] sm:$0xff]
  %v262 = vld [vmem:[%s6 + $0x120] sm:$0xff]
  %v263 = vld [vmem:[%s6 + $0x128] sm:$0xff]
  %v264 = vld [vmem:[%s6 + $0x130] sm:$0xff]
  %v265 = vld [vmem:[%s6 + $0x138] sm:$0xff]
  %v266 = vld [vmem:[%s6 + $0x140] sm:$0xff]
  %v267 = vld [vmem:[%s6 + $0x148] sm:$0xff]
  %v268 = vld [vmem:[%s6 + $0x150] sm:$0xff]
  %v269 = vld [vmem:[%s6 + $0x158] sm:$0xff]
  %v270 = vld [vmem:[%s6 + $0x160] sm:$0xff]
  %v271 = vld [vmem:[%s6 + $0x168] sm:$0xff]
  %v272 = vld [vmem:[%s6 + $0x170] sm:$0xff]
  %v273 = vld [vmem:[%s6 + $0x178] sm:$0xff]
  %v274 = vld [vmem:[%s6 + $0x180] sm:$0xff]
  %v275 = vld [vmem:[%s6 + $0x188] sm:$0xff]
  %v276 = vld [vmem:[%s6 + $0x190] sm:$0xff]
  %v277 = vld [vmem:[%s6 + $0x198] sm:$0xff]
  %v278 = vld [vmem:[%s6 + $0x1a0] sm:$0xff]
  %v279 = vld [vmem:[%s6 + $0x1a8] sm:$0xff]
  %v280 = vld [vmem:[%s6 + $0x1b0] sm:$0xff]
  %v281 = vld [vmem:[%s6 + $0x1b8] sm:$0xff]
  %v282 = vld [vmem:[%s6 + $0x1c0] sm:$0xff]
  %v283 = vld [vmem:[%s6 + $0x1c8] sm:$0xff]
  %v284 = vld [vmem:[%s6 + $0x1d0] sm:$0xff]
  %v285 = vld [vmem:[%s6 + $0x1d8] sm:$0xff]
  %v286 = vld [vmem:[%s6 + $0x1e0] sm:$0xff]
  %v287 = vld [vmem:[%s6 + $0x1e8] sm:$0xff]
  %v288 = vld [vmem:[%s6 + $0x1f0] sm:$0xff]
  %v289 = vld [vmem:[%s6 + $0x1f8] sm:$0xff]
  %v290 = vld [vmem:[%s6 + $0x200] sm:$0xff]
  %v291 = vld [vmem:[%s6 + $0x208] sm:$0xff]
  %v292 = vld [vmem:[%s6 + $0x210] sm:$0xff]
  %v293 = vld [vmem:[%s6 + $0x218] sm:$0xff]
  %v294 = vld [vmem:[%s6 + $0x220] sm:$0xff]
  %v295 = vld [vmem:[%s6 + $0x228] sm:$0xff]
  %v296 = vld [vmem:[%s6 + $0x230] sm:$0xff]
  %v297 = vld [vmem:[%s6 + $0x238] sm:$0xff]
  %v298 = vld [vmem:[%s6 + $0x240] sm:$0xff]
  %v299 = vld [vmem:[%s6 + $0x248] sm:$0xff]
  %v300 = vld [vmem:[%s6 + $0x250] sm:$0xff]
  %v301 = vld [vmem:[%s6 + $0x258] sm:$0xff]
  %v302 = vld [vmem:[%s6 + $0x260] sm:$0xff]
  %v303 = vld [vmem:[%s6 + $0x268] sm:$0xff]
  %v304 = vld [vmem:[%s6 + $0x270] sm:$0xff]
  %v305 = vld [vmem:[%s6 + $0x278] sm:$0xff]
  %v306 = vld [vmem:[%s6 + $0x280] sm:$0xff]
  %v307 = vld [vmem:[%s6 + $0x288] sm:$0xff]
  %v308 = vld [vmem:[%s6 + $0x290] sm:$0xff]
  %v309 = vld [vmem:[%s6 + $0x298] sm:$0xff]
  %v310 = vld [vmem:[%s6 + $0x2a0] sm:$0xff]
  %v311 = vld [vmem:[%s6 + $0x2a8] sm:$0xff]
  %v312 = vld [vmem:[%s6 + $0x2b0] sm:$0xff]
  %v313 = vld [vmem:[%s6 + $0x2b8] sm:$0xff]
  %v314 = vld [vmem:[%s6 + $0x2c0] sm:$0xff]
  %v315 = vld [vmem:[%s6 + $0x2c8] sm:$0xff]
  %v316 = vld [vmem:[%s6 + $0x2d0] sm:$0xff]
  %v317 = vld [vmem:[%s6 + $0x2d8] sm:$0xff]
  %v318 = vld [vmem:[%s6 + $0x2e0] sm:$0xff]
  %v319 = vld [vmem:[%s6 + $0x2e8] sm:$0xff]
  %v320 = vld [vmem:[%s6 + $0x2f0] sm:$0xff]
  %v321 = vld [vmem:[%s6 + $0x2f8] sm:$0xff]
  %v322 = vld [vmem:[%s6 + $0x300] sm:$0xff]
  %v323 = vld [vmem:[%s6 + $0x308] sm:$0xff]
  %v324 = vld [vmem:[%s6 + $0x310] sm:$0xff]
  %v325 = vld [vmem:[%s6 + $0x318] sm:$0xff]
  %v326 = vld [vmem:[%s6 + $0x320] sm:$0xff]
  %v327 = vld [vmem:[%s6 + $0x328] sm:$0xff]
  %v328 = vld [vmem:[%s6 + $0x330] sm:$0xff]
  %v329 = vld [vmem:[%s6 + $0x338] sm:$0xff]
  %v330 = vld [vmem:[%s6 + $0x340] sm:$0xff]
  %v331 = vld [vmem:[%s6 + $0x348] sm:$0xff]
  %v332 = vld [vmem:[%s6 + $0x350] sm:$0xff]
  %v333 = vld [vmem:[%s6 + $0x358] sm:$0xff]
  %v334 = vld [vmem:[%s6 + $0x360] sm:$0xff]
  %v335 = vld [vmem:[%s6 + $0x368] sm:$0xff]
  %v336 = vld [vmem:[%s6 + $0x370] sm:$0xff]
  %v337 = vld [vmem:[%s6 + $0x378] sm:$0xff]
  %v338 = vld [vmem:[%s6 + $0x380] sm:$0xff]
  %v339 = vld [vmem:[%s6 + $0x388] sm:$0xff]
  %v340 = vld [vmem:[%s6 + $0x390] sm:$0xff]
  %v341 = vld [vmem:[%s6 + $0x398] sm:$0xff]
  %v342 = vld [vmem:[%s6 + $0x3a0] sm:$0xff]
  %v343 = vld [vmem:[%s6 + $0x3a8] sm:$0xff]
  %v344 = vld [vmem:[%s6 + $0x3b0] sm:$0xff]
  %v345 = vld [vmem:[%s6 + $0x3b8] sm:$0xff]
  %v346 = vld [vmem:[%s6 + $0x3c0] sm:$0xff]
  %v347 = vld [vmem:[%s6 + $0x3c8] sm:$0xff]
  %v348 = vld [vmem:[%s6 + $0x3d0] sm:$0xff]
  %v349 = vld [vmem:[%s6 + $0x3d8] sm:$0xff]
  %v350 = vld [vmem:[%s6 + $0x3e0] sm:$0xff]
  %v351 = vld [vmem:[%s6 + $0x3e8] sm:$0xff]
  %v352 = vld [vmem:[%s6 + $0x3f0] sm:$0xff]
  %v353 = vld [vmem:[%s6 + $0x3f8] sm:$0xff]
  %354 = vmatprep.subr.mxu0 %v227
  %355 = vmatpush1.msra.mxu0 %v226
  %356 = vmatprep.subr.mxu0 %v231
  %357 = vmatpush1.msra.mxu0 %v230
  %358 = vmatprep.subr.mxu0 %v235
  %359 = vmatpush1.msra.mxu0 %v234
  %360 = vmatprep.subr.mxu0 %v239
  %361 = vmatpush1.msra.mxu0 %v238
  %362 = vmatprep.subr.mxu0 %v243
  %363 = vmatpush1.msra.mxu0 %v242
  %364 = vmatprep.subr.mxu0 %v247
  %365 = vmatpush1.msra.mxu0 %v246
  %366 = vmatprep.subr.mxu0 %v251
  %367 = vmatpush1.msra.mxu0 %v250
  %368 = vmatprep.subr.mxu0 %v255
  %369 = vmatpush1.msra.mxu0 %v254
  %370 = vmatprep.subr.mxu0 %v259
  %371 = vmatpush1.msra.mxu0 %v258
  %372 = vmatprep.subr.mxu0 %v263
  %373 = vmatpush1.msra.mxu0 %v262
  %374 = vmatprep.subr.mxu0 %v267
  %375 = vmatpush1.msra.mxu0 %v266
  %376 = vmatprep.subr.mxu0 %v271
  %377 = vmatpush1.msra.mxu0 %v270
  %378 = vmatprep.subr.mxu0 %v275
  %379 = vmatpush1.msra.mxu0 %v274
  %380 = vmatprep.subr.mxu0 %v279
  %381 = vmatpush1.msra.mxu0 %v278
  %382 = vmatprep.subr.mxu0 %v283
  %383 = vmatpush1.msra.mxu0 %v282
  %384 = vmatprep.subr.mxu0 %v287
  %385 = vmatpush1.msra.mxu0 %v286
  %386 = vmatprep.subr.mxu0 %v291
  %387 = vmatpush1.msra.mxu0 %v290
  %388 = vmatprep.subr.mxu0 %v295
  %389 = vmatpush1.msra.mxu0 %v294
  %390 = vmatprep.subr.mxu0 %v299
  %391 = vmatpush1.msra.mxu0 %v298
  %392 = vmatprep.subr.mxu0 %v303
  %393 = vmatpush1.msra.mxu0 %v302
  %394 = vmatprep.subr.mxu0 %v307
  %395 = vmatpush1.msra.mxu0 %v306
  %396 = vmatprep.subr.mxu0 %v311
  %397 = vmatpush1.msra.mxu0 %v310
  %398 = vmatprep.subr.mxu0 %v315
  %399 = vmatpush1.msra.mxu0 %v314
  %400 = vmatprep.subr.mxu0 %v319
  %401 = vmatpush1.msra.mxu0 %v318
  %402 = vmatprep.subr.mxu0 %v323
  %403 = vmatpush1.msra.mxu0 %v322
  %404 = vmatprep.subr.mxu0 %v327
  %405 = vmatpush1.msra.mxu0 %v326
  %406 = vmatprep.subr.mxu0 %v331
  %407 = vmatpush1.msra.mxu0 %v330
  %408 = vmatprep.subr.mxu0 %v335
  %409 = vmatpush1.msra.mxu0 %v334
  %410 = vmatprep.subr.mxu0 %v339
  %411 = vmatpush1.msra.mxu0 %v338
  %412 = vmatprep.subr.mxu0 %v343
  %413 = vmatpush1.msra.mxu0 %v342
  %414 = vmatprep.subr.mxu0 %v347
  %415 = vmatpush1.msra.mxu0 %v346
  %416 = vmatprep.subr.mxu0 %v351
  %417 = vmatpush1.msra.mxu0 %v350
  %418 = vmatprep.mubr.f32.mxu0 %v225
  %419 = vmatmul.mubr.f32.gmra.mrb[0].mxu0 %v132
  %v420 = vpop.f32.mrb[0].mxu0
  %v421 = vadd.f32 0.0, %v420
  %v422 = vpop.f32.mrb[0].mxu0
  %v423 = vadd.f32 0.0, %v422
  %424 = vdwg.mxu0
  %425 = vmatprep.subr.mxu0 %v229
  %426 = vmatpush1.msra.mxu0 %v228
  %427 = vmatprep.subr.mxu0 %v233
  %428 = vmatpush1.msra.mxu0 %v232
  %429 = vmatprep.subr.mxu0 %v237
  %430 = vmatpush1.msra.mxu0 %v236
  %431 = vmatprep.subr.mxu0 %v241
  %432 = vmatpush1.msra.mxu0 %v240
  %433 = vmatprep.subr.mxu0 %v245
  %434 = vmatpush1.msra.mxu0 %v244
  %435 = vmatprep.subr.mxu0 %v249
  %436 = vmatpush1.msra.mxu0 %v248
  %437 = vmatprep.subr.mxu0 %v253
  %438 = vmatpush1.msra.mxu0 %v252
  %439 = vmatprep.subr.mxu0 %v257
  %440 = vmatpush1.msra.mxu0 %v256
  %441 = vmatprep.subr.mxu0 %v261
  %442 = vmatpush1.msra.mxu0 %v260
  %443 = vmatprep.subr.mxu0 %v265
  %444 = vmatpush1.msra.mxu0 %v264
  %445 = vmatprep.subr.mxu0 %v269
  %446 = vmatpush1.msra.mxu0 %v268
  %447 = vmatprep.subr.mxu0 %v273
  %448 = vmatpush1.msra.mxu0 %v272
  %449 = vmatprep.subr.mxu0 %v277
  %450 = vmatpush1.msra.mxu0 %v276
  %451 = vmatprep.subr.mxu0 %v281
  %452 = vmatpush1.msra.mxu0 %v280
  %453 = vmatprep.subr.mxu0 %v285
  %454 = vmatpush1.msra.mxu0 %v284
  %455 = vmatprep.subr.mxu0 %v289
  %456 = vmatpush1.msra.mxu0 %v288
  %457 = vmatprep.subr.mxu0 %v293
  %458 = vmatpush1.msra.mxu0 %v292
  %459 = vmatprep.subr.mxu0 %v297
  %460 = vmatpush1.msra.mxu0 %v296
  %461 = vmatprep.subr.mxu0 %v301
  %462 = vmatpush1.msra.mxu0 %v300
  %463 = vmatprep.subr.mxu0 %v305
  %464 = vmatpush1.msra.mxu0 %v304
  %465 = vmatprep.subr.mxu0 %v309
  %466 = vmatpush1.msra.mxu0 %v308
  %467 = vmatprep.subr.mxu0 %v313
  %468 = vmatpush1.msra.mxu0 %v312
  %469 = vmatprep.subr.mxu0 %v317
  %470 = vmatpush1.msra.mxu0 %v316
  %471 = vmatprep.subr.mxu0 %v321
  %472 = vmatpush1.msra.mxu0 %v320
  %473 = vmatprep.subr.mxu0 %v325
  %474 = vmatpush1.msra.mxu0 %v324
  %475 = vmatprep.subr.mxu0 %v329
  %476 = vmatpush1.msra.mxu0 %v328
  %477 = vmatprep.subr.mxu0 %v333
  %478 = vmatpush1.msra.mxu0 %v332
  %479 = vmatprep.subr.mxu0 %v337
  %480 = vmatpush1.msra.mxu0 %v336
  %481 = vmatprep.subr.mxu0 %v341
  %482 = vmatpush1.msra.mxu0 %v340
  %483 = vmatprep.subr.mxu0 %v345
  %484 = vmatpush1.msra.mxu0 %v344
  %485 = vmatprep.subr.mxu0 %v349
  %486 = vmatpush1.msra.mxu0 %v348
  %487 = vmatprep.subr.mxu0 %v353
  %488 = vmatpush1.msra.mxu0 %v352
  %489 = vmatprep.mubr.f32.mxu0 %v225
  %490 = vmatmul.mubr.f32.gmra.mrb[0].mxu0 %v132
  %v491 = vpop.f32.mrb[0].mxu0
  %v492 = vadd.f32 0.0, %v491
  %v493 = vpop.f32.mrb[0].mxu0
  %v494 = vadd.f32 0.0, %v493
  %495 = vdwg.mxu0
  %v500 = vcombine.low %v421, %v423
  %v501 = vcombine.low %v492, %v494
  %v503 = vunpack.c.l.s4 1983009808
  %v504 = vunpack.c.0.s8 %v503
  %v505 = vlaneseq
  %v506 = vshrl.u32 %v505, 7
  %v507 = vsub.s32 %v504, %v506
  %v508 = vrot.slane %v500, %v507
  %v510 = vunpack.c.l.s4 1983009808
  %v511 = vunpack.c.0.s8 %v510
  %v512 = vlaneseq
  %v513 = vshrl.u32 %v512, 7
  %v514 = vsub.s32 %v511, %v513
  %v515 = vrot.slane %v501, %v514
  %v516 = vcombine.low %v508, %v515
  %518 = vst [vmem:[%s10] sm:$0xff] %v516
  %v519 = vld [vmem:[%s7] sm:$0xff]
  %v520 = vld [vmem:[%s7 + $0x8] sm:$0xf]
  %v521 = vld [vmem:[%s8] sm:$0xff]
  %v522 = vld [vmem:[%s8 + $0x8] sm:$0xff]
  %v523 = vld [vmem:[%s8 + $0x10] sm:$0xff]
  %v524 = vld [vmem:[%s8 + $0x18] sm:$0xff]
  %v525 = vld [vmem:[%s8 + $0x20] sm:$0xff]
  %v526 = vld [vmem:[%s8 + $0x28] sm:$0xff]
  %v527 = vld [vmem:[%s8 + $0x30] sm:$0xff]
  %v528 = vld [vmem:[%s8 + $0x38] sm:$0xff]
  %v529 = vld [vmem:[%s8 + $0x40] sm:$0xff]
  %v530 = vld [vmem:[%s8 + $0x48] sm:$0xff]
  %v531 = vld [vmem:[%s8 + $0x50] sm:$0xff]
  %v532 = vld [vmem:[%s8 + $0x58] sm:$0xff]
  %v533 = vld [vmem:[%s8 + $0x60] sm:$0xff]
  %v534 = vld [vmem:[%s8 + $0x68] sm:$0xff]
  %v535 = vld [vmem:[%s8 + $0x70] sm:$0xff]
  %v536 = vld [vmem:[%s8 + $0x78] sm:$0xff]
  %v537 = vld [vmem:[%s8 + $0x80] sm:$0xff]
  %v538 = vld [vmem:[%s8 + $0x88] sm:$0xff]
  %v539 = vld [vmem:[%s8 + $0x90] sm:$0xff]
  %v540 = vld [vmem:[%s8 + $0x98] sm:$0xff]
  %v541 = vld [vmem:[%s8 + $0xa0] sm:$0xff]
  %v542 = vld [vmem:[%s8 + $0xa8] sm:$0xff]
  %v543 = vld [vmem:[%s8 + $0xb0] sm:$0xff]
  %v544 = vld [vmem:[%s8 + $0xb8] sm:$0xff]
  %v545 = vld [vmem:[%s8 + $0xc0] sm:$0xff]
  %v546 = vld [vmem:[%s8 + $0xc8] sm:$0xff]
  %v547 = vld [vmem:[%s8 + $0xd0] sm:$0xff]
  %v548 = vld [vmem:[%s8 + $0xd8] sm:$0xff]
  %v549 = vld [vmem:[%s8 + $0xe0] sm:$0xff]
  %v550 = vld [vmem:[%s8 + $0xe8] sm:$0xff]
  %v551 = vld [vmem:[%s8 + $0xf0] sm:$0xff]
  %v552 = vld [vmem:[%s8 + $0xf8] sm:$0xff]
  %v553 = vld [vmem:[%s8 + $0x100] sm:$0xff]
  %v554 = vld [vmem:[%s8 + $0x108] sm:$0xff]
  %v555 = vld [vmem:[%s8 + $0x110] sm:$0xff]
  %v556 = vld [vmem:[%s8 + $0x118] sm:$0xff]
  %v557 = vld [vmem:[%s8 + $0x120] sm:$0xff]
  %v558 = vld [vmem:[%s8 + $0x128] sm:$0xff]
  %v559 = vld [vmem:[%s8 + $0x130] sm:$0xff]
  %v560 = vld [vmem:[%s8 + $0x138] sm:$0xff]
  %v561 = vld [vmem:[%s8 + $0x140] sm:$0xff]
  %v562 = vld [vmem:[%s8 + $0x148] sm:$0xff]
  %v563 = vld [vmem:[%s8 + $0x150] sm:$0xff]
  %v564 = vld [vmem:[%s8 + $0x158] sm:$0xff]
  %v565 = vld [vmem:[%s8 + $0x160] sm:$0xff]
  %v566 = vld [vmem:[%s8 + $0x168] sm:$0xff]
  %v567 = vld [vmem:[%s8 + $0x170] sm:$0xff]
  %v568 = vld [vmem:[%s8 + $0x178] sm:$0xff]
  %v569 = vld [vmem:[%s8 + $0x180] sm:$0xff]
  %v570 = vld [vmem:[%s8 + $0x188] sm:$0xff]
  %v571 = vld [vmem:[%s8 + $0x190] sm:$0xff]
  %v572 = vld [vmem:[%s8 + $0x198] sm:$0xff]
  %v573 = vld [vmem:[%s8 + $0x1a0] sm:$0xff]
  %v574 = vld [vmem:[%s8 + $0x1a8] sm:$0xff]
  %v575 = vld [vmem:[%s8 + $0x1b0] sm:$0xff]
  %v576 = vld [vmem:[%s8 + $0x1b8] sm:$0xff]
  %v577 = vld [vmem:[%s8 + $0x1c0] sm:$0xff]
  %v578 = vld [vmem:[%s8 + $0x1c8] sm:$0xff]
  %v579 = vld [vmem:[%s8 + $0x1d0] sm:$0xff]
  %v580 = vld [vmem:[%s8 + $0x1d8] sm:$0xff]
  %v581 = vld [vmem:[%s8 + $0x1e0] sm:$0xff]
  %v582 = vld [vmem:[%s8 + $0x1e8] sm:$0xff]
  %v583 = vld [vmem:[%s8 + $0x1f0] sm:$0xff]
  %v584 = vld [vmem:[%s8 + $0x1f8] sm:$0xff]
  %585 = vmatprep.subr.mxu0 %v522
  %586 = vmatpush1.msra.mxu0 %v521
  %587 = vmatprep.subr.mxu0 %v526
  %588 = vmatpush1.msra.mxu0 %v525
  %589 = vmatprep.subr.mxu0 %v530
  %590 = vmatpush1.msra.mxu0 %v529
  %591 = vmatprep.subr.mxu0 %v534
  %592 = vmatpush1.msra.mxu0 %v533
  %593 = vmatprep.subr.mxu0 %v538
  %594 = vmatpush1.msra.mxu0 %v537
  %595 = vmatprep.subr.mxu0 %v542
  %596 = vmatpush1.msra.mxu0 %v541
  %597 = vmatprep.subr.mxu0 %v546
  %598 = vmatpush1.msra.mxu0 %v545
  %599 = vmatprep.subr.mxu0 %v550
  %600 = vmatpush1.msra.mxu0 %v549
  %601 = vmatprep.subr.mxu0 %v554
  %602 = vmatpush1.msra.mxu0 %v553
  %603 = vmatprep.subr.mxu0 %v558
  %604 = vmatpush1.msra.mxu0 %v557
  %605 = vmatprep.subr.mxu0 %v562
  %606 = vmatpush1.msra.mxu0 %v561
  %607 = vmatprep.subr.mxu0 %v566
  %608 = vmatpush1.msra.mxu0 %v565
  %609 = vmatprep.subr.mxu0 %v570
  %610 = vmatpush1.msra.mxu0 %v569
  %611 = vmatprep.subr.mxu0 %v574
  %612 = vmatpush1.msra.mxu0 %v573
  %613 = vmatprep.subr.mxu0 %v578
  %614 = vmatpush1.msra.mxu0 %v577
  %615 = vmatprep.subr.mxu0 %v582
  %616 = vmatpush1.msra.mxu0 %v581
  %617 = vmatprep.subr.mxu0 0.0
  %618 = vmatpush1.msra.mxu0 0.0
  %619 = vmatprep.subr.mxu0 0.0
  %620 = vmatpush1.msra.mxu0 0.0
  %621 = vmatprep.subr.mxu0 0.0
  %622 = vmatpush1.msra.mxu0 0.0
  %623 = vmatprep.subr.mxu0 0.0
  %624 = vmatpush1.msra.mxu0 0.0
  %625 = vmatprep.subr.mxu0 0.0
  %626 = vmatpush1.msra.mxu0 0.0
  %627 = vmatprep.subr.mxu0 0.0
  %628 = vmatpush1.msra.mxu0 0.0
  %629 = vmatprep.subr.mxu0 0.0
  %630 = vmatpush1.msra.mxu0 0.0
  %631 = vmatprep.subr.mxu0 0.0
  %632 = vmatpush1.msra.mxu0 0.0
  %633 = vmatprep.subr.mxu0 0.0
  %634 = vmatpush1.msra.mxu0 0.0
  %635 = vmatprep.subr.mxu0 0.0
  %636 = vmatpush1.msra.mxu0 0.0
  %637 = vmatprep.subr.mxu0 0.0
  %638 = vmatpush1.msra.mxu0 0.0
  %639 = vmatprep.subr.mxu0 0.0
  %640 = vmatpush1.msra.mxu0 0.0
  %641 = vmatprep.subr.mxu0 0.0
  %642 = vmatpush1.msra.mxu0 0.0
  %643 = vmatprep.subr.mxu0 0.0
  %644 = vmatpush1.msra.mxu0 0.0
  %645 = vmatprep.subr.mxu0 0.0
  %646 = vmatpush1.msra.mxu0 0.0
  %647 = vmatprep.subr.mxu0 0.0
  %648 = vmatpush1.msra.mxu0 0.0
  %649 = vmatprep.mubr.f32.mxu0 0.0
  %650 = vmatmul.mubr.f32.gmra.mrb[0].mxu0 %v519
  %v651 = vpop.f32.mrb[0].mxu0
  %v652 = vadd.f32 0.0, %v651
  %v653 = vpop.f32.mrb[0].mxu0
  %v654 = vadd.f32 0.0, %v653
  %655 = vmatprep.mubr.f32.mxu0 0.0
  %656 = vmatmul.mubr.f32.gmra.mrb[0].mxu0 %v520
  %v657 = vpop.f32.mrb[0].mxu0
  %v658 = vadd.f32 0.0, %v657
  %v659 = vpop.f32.mrb[0].mxu0
  %v660 = vadd.f32 0.0, %v659
  %661 = vdwg.mxu0
  %662 = vmatprep.subr.mxu0 %v524
  %663 = vmatpush1.msra.mxu0 %v523
  %664 = vmatprep.subr.mxu0 %v528
  %665 = vmatpush1.msra.mxu0 %v527
  %666 = vmatprep.subr.mxu0 %v532
  %667 = vmatpush1.msra.mxu0 %v531
  %668 = vmatprep.subr.mxu0 %v536
  %669 = vmatpush1.msra.mxu0 %v535
  %670 = vmatprep.subr.mxu0 %v540
  %671 = vmatpush1.msra.mxu0 %v539
  %672 = vmatprep.subr.mxu0 %v544
  %673 = vmatpush1.msra.mxu0 %v543
  %674 = vmatprep.subr.mxu0 %v548
  %675 = vmatpush1.msra.mxu0 %v547
  %676 = vmatprep.subr.mxu0 %v552
  %677 = vmatpush1.msra.mxu0 %v551
  %678 = vmatprep.subr.mxu0 %v556
  %679 = vmatpush1.msra.mxu0 %v555
  %680 = vmatprep.subr.mxu0 %v560
  %681 = vmatpush1.msra.mxu0 %v559
  %682 = vmatprep.subr.mxu0 %v564
  %683 = vmatpush1.msra.mxu0 %v563
  %684 = vmatprep.subr.mxu0 %v568
  %685 = vmatpush1.msra.mxu0 %v567
  %686 = vmatprep.subr.mxu0 %v572
  %687 = vmatpush1.msra.mxu0 %v571
  %688 = vmatprep.subr.mxu0 %v576
  %689 = vmatpush1.msra.mxu0 %v575
  %690 = vmatprep.subr.mxu0 %v580
  %691 = vmatpush1.msra.mxu0 %v579
  %692 = vmatprep.subr.mxu0 %v584
  %693 = vmatpush1.msra.mxu0 %v583
  %694 = vmatprep.subr.mxu0 0.0
  %695 = vmatpush1.msra.mxu0 0.0
  %696 = vmatprep.subr.mxu0 0.0
  %697 = vmatpush1.msra.mxu0 0.0
  %698 = vmatprep.subr.mxu0 0.0
  %699 = vmatpush1.msra.mxu0 0.0
  %700 = vmatprep.subr.mxu0 0.0
  %701 = vmatpush1.msra.mxu0 0.0
  %702 = vmatprep.subr.mxu0 0.0
  %703 = vmatpush1.msra.mxu0 0.0
  %704 = vmatprep.subr.mxu0 0.0
  %705 = vmatpush1.msra.mxu0 0.0
  %706 = vmatprep.subr.mxu0 0.0
  %707 = vmatpush1.msra.mxu0 0.0
  %708 = vmatprep.subr.mxu0 0.0
  %709 = vmatpush1.msra.mxu0 0.0
  %710 = vmatprep.subr.mxu0 0.0
  %711 = vmatpush1.msra.mxu0 0.0
  %712 = vmatprep.subr.mxu0 0.0
  %713 = vmatpush1.msra.mxu0 0.0
  %714 = vmatprep.subr.mxu0 0.0
  %715 = vmatpush1.msra.mxu0 0.0
  %716 = vmatprep.subr.mxu0 0.0
  %717 = vmatpush1.msra.mxu0 0.0
  %718 = vmatprep.subr.mxu0 0.0
  %719 = vmatpush1.msra.mxu0 0.0
  %720 = vmatprep.subr.mxu0 0.0
  %721 = vmatpush1.msra.mxu0 0.0
  %722 = vmatprep.subr.mxu0 0.0
  %723 = vmatpush1.msra.mxu0 0.0
  %724 = vmatprep.subr.mxu0 0.0
  %725 = vmatpush1.msra.mxu0 0.0
  %726 = vmatprep.mubr.f32.mxu0 0.0
  %727 = vmatmul.mubr.f32.gmra.mrb[0].mxu0 %v519
  %v728 = vpop.f32.mrb[0].mxu0
  %v729 = vadd.f32 0.0, %v728
  %v730 = vpop.f32.mrb[0].mxu0
  %v731 = vadd.f32 0.0, %v730
  %732 = vmatprep.mubr.f32.mxu0 0.0
  %733 = vmatmul.mubr.f32.gmra.mrb[0].mxu0 %v520
  %v734 = vpop.f32.mrb[0].mxu0
  %v735 = vadd.f32 0.0, %v734
  %v736 = vpop.f32.mrb[0].mxu0
  %v737 = vadd.f32 0.0, %v736
  %738 = vdwg.mxu0
  %739 = vst [vmem:[%s11] sm:$0xff] %v652
  %740 = vst [vmem:[%s11 + $0x8] sm:$0xff] %v654
  %741 = vst [vmem:[%s11 + $0x10] sm:$0xff] %v729
  %742 = vst [vmem:[%s11 + $0x18] sm:$0xff] %v731
  %743 = vst [vmem:[%s11 + $0x20] sm:$0xf] %v658
  %744 = vst [vmem:[%s11 + $0x28] sm:$0xf] %v660
  %745 = vst [vmem:[%s11 + $0x30] sm:$0xf] %v735
  %746 = vst [vmem:[%s11 + $0x38] sm:$0xf] %v737
  %v747 = vld [vmem:[%s9] sm:$0xff]
  %v748 = vld [vmem:[%s9 + $0x8] sm:$0xff]
  %v749 = vld [vmem:[%s9 + $0x10] sm:$0xff]
  %v750 = vld [vmem:[%s9 + $0x18] sm:$0xf]
  %v751 = vld [vmem:[%s8] sm:$0xff]
  %v752 = vld [vmem:[%s8 + $0x8] sm:$0xff]
  %v753 = vld [vmem:[%s8 + $0x10] sm:$0xff]
  %v754 = vld [vmem:[%s8 + $0x18] sm:$0xff]
  %v755 = vld [vmem:[%s8 + $0x20] sm:$0xff]
  %v756 = vld [vmem:[%s8 + $0x28] sm:$0xff]
  %v757 = vld [vmem:[%s8 + $0x30] sm:$0xff]
  %v758 = vld [vmem:[%s8 + $0x38] sm:$0xff]
  %v759 = vld [vmem:[%s8 + $0x40] sm:$0xff]
  %v760 = vld [vmem:[%s8 + $0x48] sm:$0xff]
  %v761 = vld [vmem:[%s8 + $0x50] sm:$0xff]
  %v762 = vld [vmem:[%s8 + $0x58] sm:$0xff]
  %v763 = vld [vmem:[%s8 + $0x60] sm:$0xff]
  %v764 = vld [vmem:[%s8 + $0x68] sm:$0xff]
  %v765 = vld [vmem:[%s8 + $0x70] sm:$0xff]
  %v766 = vld [vmem:[%s8 + $0x78] sm:$0xff]
  %v767 = vld [vmem:[%s8 + $0x80] sm:$0xff]
  %v768 = vld [vmem:[%s8 + $0x88] sm:$0xff]
  %v769 = vld [vmem:[%s8 + $0x90] sm:$0xff]
  %v770 = vld [vmem:[%s8 + $0x98] sm:$0xff]
  %v771 = vld [vmem:[%s8 + $0xa0] sm:$0xff]
  %v772 = vld [vmem:[%s8 + $0xa8] sm:$0xff]
  %v773 = vld [vmem:[%s8 + $0xb0] sm:$0xff]
  %v774 = vld [vmem:[%s8 + $0xb8] sm:$0xff]
  %v775 = vld [vmem:[%s8 + $0xc0] sm:$0xff]
  %v776 = vld [vmem:[%s8 + $0xc8] sm:$0xff]
  %v777 = vld [vmem:[%s8 + $0xd0] sm:$0xff]
  %v778 = vld [vmem:[%s8 + $0xd8] sm:$0xff]
  %v779 = vld [vmem:[%s8 + $0xe0] sm:$0xff]
  %v780 = vld [vmem:[%s8 + $0xe8] sm:$0xff]
  %v781 = vld [vmem:[%s8 + $0xf0] sm:$0xff]
  %v782 = vld [vmem:[%s8 + $0xf8] sm:$0xff]
  %v783 = vld [vmem:[%s8 + $0x100] sm:$0xff]
  %v784 = vld [vmem:[%s8 + $0x108] sm:$0xff]
  %v785 = vld [vmem:[%s8 + $0x110] sm:$0xff]
  %v786 = vld [vmem:[%s8 + $0x118] sm:$0xff]
  %v787 = vld [vmem:[%s8 + $0x120] sm:$0xff]
  %v788 = vld [vmem:[%s8 + $0x128] sm:$0xff]
  %v789 = vld [vmem:[%s8 + $0x130] sm:$0xff]
  %v790 = vld [vmem:[%s8 + $0x138] sm:$0xff]
  %v791 = vld [vmem:[%s8 + $0x140] sm:$0xff]
  %v792 = vld [vmem:[%s8 + $0x148] sm:$0xff]
  %v793 = vld [vmem:[%s8 + $0x150] sm:$0xff]
  %v794 = vld [vmem:[%s8 + $0x158] sm:$0xff]
  %v795 = vld [vmem:[%s8 + $0x160] sm:$0xff]
  %v796 = vld [vmem:[%s8 + $0x168] sm:$0xff]
  %v797 = vld [vmem:[%s8 + $0x170] sm:$0xff]
  %v798 = vld [vmem:[%s8 + $0x178] sm:$0xff]
  %v799 = vld [vmem:[%s8 + $0x180] sm:$0xff]
  %v800 = vld [vmem:[%s8 + $0x188] sm:$0xff]
  %v801 = vld [vmem:[%s8 + $0x190] sm:$0xff]
  %v802 = vld [vmem:[%s8 + $0x198] sm:$0xff]
  %v803 = vld [vmem:[%s8 + $0x1a0] sm:$0xff]
  %v804 = vld [vmem:[%s8 + $0x1a8] sm:$0xff]
  %v805 = vld [vmem:[%s8 + $0x1b0] sm:$0xff]
  %v806 = vld [vmem:[%s8 + $0x1b8] sm:$0xff]
  %v807 = vld [vmem:[%s8 + $0x1c0] sm:$0xff]
  %v808 = vld [vmem:[%s8 + $0x1c8] sm:$0xff]
  %v809 = vld [vmem:[%s8 + $0x1d0] sm:$0xff]
  %v810 = vld [vmem:[%s8 + $0x1d8] sm:$0xff]
  %v811 = vld [vmem:[%s8 + $0x1e0] sm:$0xff]
  %v812 = vld [vmem:[%s8 + $0x1e8] sm:$0xff]
  %v813 = vld [vmem:[%s8 + $0x1f0] sm:$0xff]
  %v814 = vld [vmem:[%s8 + $0x1f8] sm:$0xff]
  %815 = vmatprep.subr.mxu0 %v752
  %816 = vmatpush1.msra.mxu0 %v751
  %817 = vmatprep.subr.mxu0 %v756
  %818 = vmatpush1.msra.mxu0 %v755
  %819 = vmatprep.subr.mxu0 %v760
  %820 = vmatpush1.msra.mxu0 %v759
  %821 = vmatprep.subr.mxu0 %v764
  %822 = vmatpush1.msra.mxu0 %v763
  %823 = vmatprep.subr.mxu0 %v768
  %824 = vmatpush1.msra.mxu0 %v767
  %825 = vmatprep.subr.mxu0 %v772
  %826 = vmatpush1.msra.mxu0 %v771
  %827 = vmatprep.subr.mxu0 %v776
  %828 = vmatpush1.msra.mxu0 %v775
  %829 = vmatprep.subr.mxu0 %v780
  %830 = vmatpush1.msra.mxu0 %v779
  %831 = vmatprep.subr.mxu0 %v784
  %832 = vmatpush1.msra.mxu0 %v783
  %833 = vmatprep.subr.mxu0 %v788
  %834 = vmatpush1.msra.mxu0 %v787
  %835 = vmatprep.subr.mxu0 %v792
  %836 = vmatpush1.msra.mxu0 %v791
  %837 = vmatprep.subr.mxu0 %v796
  %838 = vmatpush1.msra.mxu0 %v795
  %839 = vmatprep.subr.mxu0 %v800
  %840 = vmatpush1.msra.mxu0 %v799
  %841 = vmatprep.subr.mxu0 %v804
  %842 = vmatpush1.msra.mxu0 %v803
  %843 = vmatprep.subr.mxu0 %v808
  %844 = vmatpush1.msra.mxu0 %v807
  %845 = vmatprep.subr.mxu0 %v812
  %846 = vmatpush1.msra.mxu0 %v811
  %847 = vmatprep.subr.mxu0 0.0
  %848 = vmatpush1.msra.mxu0 0.0
  %849 = vmatprep.subr.mxu0 0.0
  %850 = vmatpush1.msra.mxu0 0.0
  %851 = vmatprep.subr.mxu0 0.0
  %852 = vmatpush1.msra.mxu0 0.0
  %853 = vmatprep.subr.mxu0 0.0
  %854 = vmatpush1.msra.mxu0 0.0
  %855 = vmatprep.subr.mxu0 0.0
  %856 = vmatpush1.msra.mxu0 0.0
  %857 = vmatprep.subr.mxu0 0.0
  %858 = vmatpush1.msra.mxu0 0.0
  %859 = vmatprep.subr.mxu0 0.0
  %860 = vmatpush1.msra.mxu0 0.0
  %861 = vmatprep.subr.mxu0 0.0
  %862 = vmatpush1.msra.mxu0 0.0
  %863 = vmatprep.subr.mxu0 0.0
  %864 = vmatpush1.msra.mxu0 0.0
  %865 = vmatprep.subr.mxu0 0.0
  %866 = vmatpush1.msra.mxu0 0.0
  %867 = vmatprep.subr.mxu0 0.0
  %868 = vmatpush1.msra.mxu0 0.0
  %869 = vmatprep.subr.mxu0 0.0
  %870 = vmatpush1.msra.mxu0 0.0
  %871 = vmatprep.subr.mxu0 0.0
  %872 = vmatpush1.msra.mxu0 0.0
  %873 = vmatprep.subr.mxu0 0.0
  %874 = vmatpush1.msra.mxu0 0.0
  %875 = vmatprep.subr.mxu0 0.0
  %876 = vmatpush1.msra.mxu0 0.0
  %877 = vmatprep.subr.mxu0 0.0
  %878 = vmatpush1.msra.mxu0 0.0
  %879 = vmatprep.mubr.f32.mxu0 0.0
  %880 = vmatmul.mubr.f32.gmra.mrb[0].mxu0 %v747
  %v881 = vpop.f32.mrb[0].mxu0
  %v882 = vadd.f32 0.0, %v881
  %v883 = vpop.f32.mrb[0].mxu0
  %v884 = vadd.f32 0.0, %v883
  %885 = vmatprep.mubr.f32.mxu0 0.0
  %886 = vmatmul.mubr.f32.gmra.mrb[0].mxu0 %v748
  %v887 = vpop.f32.mrb[0].mxu0
  %v888 = vadd.f32 0.0, %v887
  %v889 = vpop.f32.mrb[0].mxu0
  %v890 = vadd.f32 0.0, %v889
  %891 = vmatprep.mubr.f32.mxu0 0.0
  %892 = vmatmul.mubr.f32.gmra.mrb[0].mxu0 %v749
  %v893 = vpop.f32.mrb[0].mxu0
  %v894 = vadd.f32 0.0, %v893
  %v895 = vpop.f32.mrb[0].mxu0
  %v896 = vadd.f32 0.0, %v895
  %897 = vmatprep.mubr.f32.mxu0 0.0
  %898 = vmatmul.mubr.f32.gmra.mrb[0].mxu0 %v750
  %v899 = vpop.f32.mrb[0].mxu0
  %v900 = vadd.f32 0.0, %v899
  %v901 = vpop.f32.mrb[0].mxu0
  %v902 = vadd.f32 0.0, %v901
  %903 = vdwg.mxu0
  %904 = vmatprep.subr.mxu0 %v754
  %905 = vmatpush1.msra.mxu0 %v753
  %906 = vmatprep.subr.mxu0 %v758
  %907 = vmatpush1.msra.mxu0 %v757
  %908 = vmatprep.subr.mxu0 %v762
  %909 = vmatpush1.msra.mxu0 %v761
  %910 = vmatprep.subr.mxu0 %v766
  %911 = vmatpush1.msra.mxu0 %v765
  %912 = vmatprep.subr.mxu0 %v770
  %913 = vmatpush1.msra.mxu0 %v769
  %914 = vmatprep.subr.mxu0 %v774
  %915 = vmatpush1.msra.mxu0 %v773
  %916 = vmatprep.subr.mxu0 %v778
  %917 = vmatpush1.msra.mxu0 %v777
  %918 = vmatprep.subr.mxu0 %v782
  %919 = vmatpush1.msra.mxu0 %v781
  %920 = vmatprep.subr.mxu0 %v786
  %921 = vmatpush1.msra.mxu0 %v785
  %922 = vmatprep.subr.mxu0 %v790
  %923 = vmatpush1.msra.mxu0 %v789
  %924 = vmatprep.subr.mxu0 %v794
  %925 = vmatpush1.msra.mxu0 %v793
  %926 = vmatprep.subr.mxu0 %v798
  %927 = vmatpush1.msra.mxu0 %v797
  %928 = vmatprep.subr.mxu0 %v802
  %929 = vmatpush1.msra.mxu0 %v801
  %930 = vmatprep.subr.mxu0 %v806
  %931 = vmatpush1.msra.mxu0 %v805
  %932 = vmatprep.subr.mxu0 %v810
  %933 = vmatpush1.msra.mxu0 %v809
  %934 = vmatprep.subr.mxu0 %v814
  %935 = vmatpush1.msra.mxu0 %v813
  %936 = vmatprep.subr.mxu0 0.0
  %937 = vmatpush1.msra.mxu0 0.0
  %938 = vmatprep.subr.mxu0 0.0
  %939 = vmatpush1.msra.mxu0 0.0
  %940 = vmatprep.subr.mxu0 0.0
  %941 = vmatpush1.msra.mxu0 0.0
  %942 = vmatprep.subr.mxu0 0.0
  %943 = vmatpush1.msra.mxu0 0.0
  %944 = vmatprep.subr.mxu0 0.0
  %945 = vmatpush1.msra.mxu0 0.0
  %946 = vmatprep.subr.mxu0 0.0
  %947 = vmatpush1.msra.mxu0 0.0
  %948 = vmatprep.subr.mxu0 0.0
  %949 = vmatpush1.msra.mxu0 0.0
  %950 = vmatprep.subr.mxu0 0.0
  %951 = vmatpush1.msra.mxu0 0.0
  %952 = vmatprep.subr.mxu0 0.0
  %953 = vmatpush1.msra.mxu0 0.0
  %954 = vmatprep.subr.mxu0 0.0
  %955 = vmatpush1.msra.mxu0 0.0
  %956 = vmatprep.subr.mxu0 0.0
  %957 = vmatpush1.msra.mxu0 0.0
  %958 = vmatprep.subr.mxu0 0.0
  %959 = vmatpush1.msra.mxu0 0.0
  %960 = vmatprep.subr.mxu0 0.0
  %961 = vmatpush1.msra.mxu0 0.0
  %962 = vmatprep.subr.mxu0 0.0
  %963 = vmatpush1.msra.mxu0 0.0
  %964 = vmatprep.subr.mxu0 0.0
  %965 = vmatpush1.msra.mxu0 0.0
  %966 = vmatprep.subr.mxu0 0.0
  %967 = vmatpush1.msra.mxu0 0.0
  %968 = vmatprep.mubr.f32.mxu0 0.0
  %969 = vmatmul.mubr.f32.gmra.mrb[0].mxu0 %v747
  %v970 = vpop.f32.mrb[0].mxu0
  %v971 = vadd.f32 0.0, %v970
  %v972 = vpop.f32.mrb[0].mxu0
  %v973 = vadd.f32 0.0, %v972
  %974 = vmatprep.mubr.f32.mxu0 0.0
  %975 = vmatmul.mubr.f32.gmra.mrb[0].mxu0 %v748
  %v976 = vpop.f32.mrb[0].mxu0
  %v977 = vadd.f32 0.0, %v976
  %v978 = vpop.f32.mrb[0].mxu0
  %v979 = vadd.f32 0.0, %v978
  %980 = vmatprep.mubr.f32.mxu0 0.0
  %981 = vmatmul.mubr.f32.gmra.mrb[0].mxu0 %v749
  %v982 = vpop.f32.mrb[0].mxu0
  %v983 = vadd.f32 0.0, %v982
  %v984 = vpop.f32.mrb[0].mxu0
  %v985 = vadd.f32 0.0, %v984
  %986 = vmatprep.mubr.f32.mxu0 0.0
  %987 = vmatmul.mubr.f32.gmra.mrb[0].mxu0 %v750
  %v988 = vpop.f32.mrb[0].mxu0
  %v989 = vadd.f32 0.0, %v988
  %v990 = vpop.f32.mrb[0].mxu0
  %v991 = vadd.f32 0.0, %v990
  %992 = vdwg.mxu0
  %993 = vst [vmem:[%s12] sm:$0xff] %v882
  %994 = vst [vmem:[%s12 + $0x8] sm:$0xff] %v884
  %995 = vst [vmem:[%s12 + $0x10] sm:$0xff] %v971
  %996 = vst [vmem:[%s12 + $0x18] sm:$0xff] %v973
  %997 = vst [vmem:[%s12 + $0x20] sm:$0xff] %v888
  %998 = vst [vmem:[%s12 + $0x28] sm:$0xff] %v890
  %999 = vst [vmem:[%s12 + $0x30] sm:$0xff] %v977
  %1000 = vst [vmem:[%s12 + $0x38] sm:$0xff] %v979
  %1001 = vst [vmem:[%s12 + $0x40] sm:$0xff] %v894
  %1002 = vst [vmem:[%s12 + $0x48] sm:$0xff] %v896
  %1003 = vst [vmem:[%s12 + $0x50] sm:$0xff] %v983
  %1004 = vst [vmem:[%s12 + $0x58] sm:$0xff] %v985
  %1005 = vst [vmem:[%s12 + $0x60] sm:$0xf] %v900
  %1006 = vst [vmem:[%s12 + $0x68] sm:$0xf] %v902
  %1007 = vst [vmem:[%s12 + $0x70] sm:$0xf] %v989
  %1008 = vst [vmem:[%s12 + $0x78] sm:$0xf] %v991
  // Predicated region
  $region42: #{caption_forward.2} parent=0 // pred_check
    _
  $region43: #{caption_forward.2} parent=0 // pred_check_branch
    %1010 = sbr.rel (0) target = $region45
  $region44: #{caption_forward.2} parent=0 // pred_region
    _
  $region45: #{caption_forward.2} parent=0 // pred_fallthru
    _
  // Predicated region
  $region46: #{caption_forward.2} parent=0 // pred_check
    _
  $region47: #{caption_forward.2} parent=0 // pred_check_branch
    %1012 = sbr.rel (0) target = $region49
  $region48: #{caption_forward.2} parent=0 // pred_region
    _
  $region49: #{caption_forward.2} parent=0 // pred_fallthru
    _
  // Predicated region
  $region50: #{caption_forward.2} parent=0 // pred_check
    _
  $region51: #{caption_forward.2} parent=0 // pred_check_branch
    %1014 = sbr.rel (0) target = $region53
  $region52: #{caption_forward.2} parent=0 // pred_region
    _
  $region53: #{caption_forward.2} parent=0 // pred_fallthru
    _
  // Predicated region
  $region54: #{caption_forward.2} parent=0 // pred_check
    _
  $region55: #{caption_forward.2} parent=0 // pred_check_branch
    %1016 = sbr.rel (0) target = $region57
  $region56: #{caption_forward.2} parent=0 // pred_region
    _
  $region57: #{caption_forward.2} parent=0 // pred_fallthru
    _
  // Predicated region
  $region58: #{caption_forward.2} parent=0 // pred_check
    _
  $region59: #{caption_forward.2} parent=0 // pred_check_branch
    %1018 = sbr.rel (0) target = $region61
  $region60: #{caption_forward.2} parent=0 // pred_region
    _
  $region61: #{caption_forward.2} parent=0 // pred_fallthru
    _
  // Predicated region
  $region62: #{caption_forward.2} parent=0 // pred_check
    _
  $region63: #{caption_forward.2} parent=0 // pred_check_branch
    %1020 = sbr.rel (0) target = $region65
  $region64: #{caption_forward.2} parent=0 // pred_region
    _
  $region65: #{caption_forward.2} parent=0 // pred_fallthru
    _

// kernel: caption_forward.3
$region0: #{caption_forward.3}
  #allocation0 [shape = 'u32[]', space=smem, size = 0x4, offset = 0x4, fixed_abs, tag = 'smem constant byte address 0x4 - core index']
  #allocation1 [shape = 'u32[144,128]{1,0:T(1,128)}', space=vmem, size = 0x12000, scoped, tag = 'internal scratch']
  #allocation2 [shape = 'f32[12,128]{1,0:T(8,128)}', space=vmem, size = 0x2000, scoped, tag = 'scratch operand']
  #allocation3 [shape = 'f32[12,128]{1,0:T(8,128)}', space=vmem, size = 0x2000, scoped, tag = 'scratch operand']
  %s0 = inlined_call_operand.vmem [shape: f32[7,12,512], index: 0, kind: input, shape index: {}]
  %s1 = inlined_call_operand.vmem [shape: f32[128,512], index: 1, kind: input, shape index: {}]
  %s2 = inlined_call_operand.vmem [shape: f32[128,128], index: 2, kind: input, shape index: {}]
  %s3 = inlined_call_operand.vmem [shape: f32[1,128], index: 3, kind: input, shape index: {}]
  %s4 = inlined_call_operand.vmem [shape: f32[7,12,128], index: 4, kind: output, shape index: {}]
  %s5 = sld [smem:[#allocation0]]
  $region53: #{caption_forward.3} parent=0
    _
  %s7 = ssub.s32 1, %s5
  %s8 = scalar_select 0, %s7, %s5
  loop: start=0, step=1, limit=9
  $region2: #{caption_forward.3} parent=0 // loop_pre_header
    _
  $region3: #{caption_forward.3} parent=0 // loop_header
    %s10 = sphi 0, %s14
    %p11 = scmp.ge.s32.totalorder %s10, 9
    %s20 = sphi 0, %s22
    %s23 = sphi 0, %s20
    %s24 = sphi 0, %s23
    %s40 = sphi 0, %s24
    %s44 = sphi 0, %s44
    %s46 = sphi 0, %s44
    %s47 = sphi 0, %s46
    %s61 = sphi 0, %s47
    %s65 = sphi 0, %s65
    %s67 = sphi 0, %s65
    %s68 = sphi 0, %s67
    %s82 = sphi 0, %s68
    %s86 = sphi 0, %s86
    %s88 = sphi 0, %s86
    %s89 = sphi 0, %s88
    %s103 = sphi 0, %s89
    %s109 = sphi 0, %s111
    %s112 = sphi 0, %s109
    %s113 = sphi 0, %s112
    %s129 = sphi 0, %s113
  $region4: #{caption_forward.3} parent=0 // loop_header_branch
    %13 = sbr.rel (%p11) target = $region8
  $region5: #{caption_forward.3} parent=0 // loop_body
    %s15 = ssub.s32 %s10, 1
    %s16 = ssub.s32 %s10, 2
    %s17 = sadd.s32 %s10, 1
    %s18 = ssub.s32 %s10, %s17
    %p19 = scmp.eq.s32.totalorder %s18, 0
    %s21 = sadd.s32 %s20, 1
    %s22 = scalar_select %p19, %s20, %s21
    %p25 = pneg %p19
    %p26 = scmp.eq.s32.totalorder %s10, 6
    %p27 = por %p25, %p26
    %p28 = scmp.ne.s32.totalorder %s20, %s23
    %p29 = scmp.eq.s32.totalorder %s10, 0
    %p30 = por %p28, %p29
    %p31 = scmp.ne.s32.totalorder %s20, %s23
    %p32 = scmp.eq.s32.totalorder %s15, 6
    %p33 = por %p31, %p32
    %p34 = scmp.ne.s32.totalorder %s23, %s24
    %p35 = scmp.eq.s32.totalorder %s15, 0
    %p36 = por %p34, %p35
    %p37 = scmp.ne.s32.totalorder %s23, %s24
    %p38 = scmp.eq.s32.totalorder %s16, 6
    %p39 = por %p37, %p38
    %p41 = scmp.ne.s32.totalorder %s24, %s40
    %p42 = scmp.eq.s32.totalorder %s16, 0
    %p43 = por %p41, %p42
    %s45 = sadd.s32 %s44, 1
    %p48 = scmp.eq.s32.totalorder %s10, 6
    %p49 = scmp.ne.s32.totalorder %s44, %s46
    %p50 = scmp.eq.s32.totalorder %s10, 0
    %p51 = por %p49, %p50
    %p52 = scmp.ne.s32.totalorder %s44, %s46
    %p53 = scmp.eq.s32.totalorder %s15, 6
    %p54 = por %p52, %p53
    %p55 = scmp.ne.s32.totalorder %s46, %s47
    %p56 = scmp.eq.s32.totalorder %s15, 0
    %p57 = por %p55, %p56
    %p58 = scmp.ne.s32.totalorder %s46, %s47
    %p59 = scmp.eq.s32.totalorder %s16, 6
    %p60 = por %p58, %p59
    %p62 = scmp.ne.s32.totalorder %s47, %s61
    %p63 = scmp.eq.s32.totalorder %s16, 0
    %p64 = por %p62, %p63
    %s66 = sadd.s32 %s65, 1
    %p69 = scmp.eq.s32.totalorder %s10, 6
    %p70 = scmp.ne.s32.totalorder %s65, %s67
    %p71 = scmp.eq.s32.totalorder %s10, 0
    %p72 = por %p70, %p71
    %p73 = scmp.ne.s32.totalorder %s65, %s67
    %p74 = scmp.eq.s32.totalorder %s15, 6
    %p75 = por %p73, %p74
    %p76 = scmp.ne.s32.totalorder %s67, %s68
    %p77 = scmp.eq.s32.totalorder %s15, 0
    %p78 = por %p76, %p77
    %p79 = scmp.ne.s32.totalorder %s67, %s68
    %p80 = scmp.eq.s32.totalorder %s16, 6
    %p81 = por %p79, %p80
    %p83 = scmp.ne.s32.totalorder %s68, %s82
    %p84 = scmp.eq.s32.totalorder %s16, 0
    %p85 = por %p83, %p84
    %s87 = sadd.s32 %s86, 1
    %p90 = scmp.eq.s32.totalorder %s10, 6
    %p91 = scmp.ne.s32.totalorder %s86, %s88
    %p92 = scmp.eq.s32.totalorder %s10, 0
    %p93 = por %p91, %p92
    %p94 = scmp.ne.s32.totalorder %s86, %s88
    %p95 = scmp.eq.s32.totalorder %s15, 6
    %p96 = por %p94, %p95
    %p97 = scmp.ne.s32.totalorder %s88, %s89
    %p98 = scmp.eq.s32.totalorder %s15, 0
    %p99 = por %p97, %p98
    %p100 = scmp.ne.s32.totalorder %s88, %s89
    %p101 = scmp.eq.s32.totalorder %s16, 6
    %p102 = por %p100, %p101
    %p104 = scmp.ne.s32.totalorder %s89, %s103
    %p105 = scmp.eq.s32.totalorder %s16, 0
    %p106 = por %p104, %p105
    %s107 = ssub.s32 %s10, %s17
    %p108 = scmp.eq.s32.totalorder %s107, 0
    %s110 = sadd.s32 %s109, 1
    %s111 = scalar_select %p108, %s109, %s110
    %p114 = pneg %p108
    %p115 = scmp.eq.s32.totalorder %s10, 6
    %p116 = por %p114, %p115
    %p117 = scmp.ne.s32.totalorder %s109, %s112
    %p118 = scmp.eq.s32.totalorder %s10, 0
    %p119 = por %p117, %p118
    %p120 = scmp.ne.s32.totalorder %s109, %s112
    %p121 = scmp.eq.s32.totalorder %s15, 6
    %p122 = por %p120, %p121
    %p123 = scmp.ne.s32.totalorder %s112, %s113
    %p124 = scmp.eq.s32.totalorder %s15, 0
    %p125 = por %p123, %p124
    %p126 = scmp.ne.s32.totalorder %s112, %s113
    %p127 = scmp.eq.s32.totalorder %s16, 6
    %p128 = por %p126, %p127
    %p130 = scmp.ne.s32.totalorder %s113, %s129
    %p131 = scmp.eq.s32.totalorder %s16, 0
    %p132 = por %p130, %p131
    %p133 = scmp.le.s32.totalorder 1, %s10
    %p134 = scmp.lt.s32.totalorder %s10, 8
    %p135 = pnand %p133, %p134
    %p136 = pneg %p135
    // Predicated region
    $region9: #{caption_forward.3} parent=5 // pred_check
      _
    $region10: #{caption_forward.3} parent=5 // pred_check_branch
      %138 = sbr.rel (%p135) target = $region12
    $region11: #{caption_forward.3} parent=5 // pred_region
      %s139 = ssub.s32 %s10, 1
      // Predicated region
      $region13: #{caption_forward.3} parent=11 // pred_check
        %p140 = pneg %p57
      $region14: #{caption_forward.3} parent=11 // pred_check_branch
        %142 = sbr.rel (%p140) target = $region16
      $region15: #{caption_forward.3} parent=11 // pred_region
        _
      $region16: #{caption_forward.3} parent=11 // pred_fallthru
        _
      // Predicated region
      $region17: #{caption_forward.3} parent=11 // pred_check
        %p143 = pneg %p78
      $region18: #{caption_forward.3} parent=11 // pred_check_branch
        %145 = sbr.rel (%p143) target = $region20
      $region19: #{caption_forward.3} parent=11 // pred_region
        _
      $region20: #{caption_forward.3} parent=11 // pred_fallthru
        _
      // Predicated region
      $region21: #{caption_forward.3} parent=11 // pred_check
        %p146 = pneg %p99
      $region22: #{caption_forward.3} parent=11 // pred_check_branch
        %148 = sbr.rel (%p146) target = $region24
      $region23: #{caption_forward.3} parent=11 // pred_region
        _
      $region24: #{caption_forward.3} parent=11 // pred_fallthru
        _
    $region12: #{caption_forward.3} parent=5 // pred_fallthru
      _
    %p149 = scmp.lt.s32.totalorder %s10, 7
    // Predicated region
    $region25: #{caption_forward.3} parent=5 // pred_check
      %p150 = pneg %p149
    $region26: #{caption_forward.3} parent=5 // pred_check_branch
      %152 = sbr.rel (%p150) target = $region28
    $region27: #{caption_forward.3} parent=5 // pred_region
      // Predicated region
      $region29: #{caption_forward.3} parent=27 // pred_check
        %p153 = pneg %p30
      $region30: #{caption_forward.3} parent=27 // pred_check_branch
        %155 = sbr.rel (%p153) target = $region32
      $region31: #{caption_forward.3} parent=27 // pred_region
        %p156 = scmp.lt.s32.totalorder %s10, 6
        %s157 = scalar_select %p156, %s10, 6
        %s158 = smul.addr %s157, 8
        %s159 = smul.addr %s158, 8
        %s160 = scalar_lea.vmem %s0, %s159
      $region32: #{caption_forward.3} parent=27 // pred_fallthru
        _
    $region28: #{caption_forward.3} parent=5 // pred_fallthru
      _
    %p161 = scmp.le.s32.totalorder 1, %s10
    %p162 = scmp.lt.s32.totalorder %s10, 8
    %p163 = pnand %p161, %p162
    %p164 = pneg %p163
    // Predicated region
    $region33: #{caption_forward.3} parent=5 // pred_check
      _
    $region34: #{caption_forward.3} parent=5 // pred_check_branch
      %166 = sbr.rel (%p163) target = $region36
    $region35: #{caption_forward.3} parent=5 // pred_region
      %s167 = ssub.s32 %s10, 1
      %p168 = scmp.lt.s32.totalorder %s15, 6
      %s169 = scalar_select %p168, %s15, 6
      %s170 = smul.addr %s169, 8
      %s171 = smul.addr %s170, 8
      %s172 = scalar_lea.vmem %s0, %s171
      %p173 = pneg %p36
      %p174 = pneg %p33
      %p175 = pneg %p57
      %p176 = pneg %p54
      %p177 = pneg %p78
      %p178 = pneg %p75
      %p179 = pneg %p99
      %p180 = pneg %p96
      %p181 = pneg %p125
      %p182 = pneg %p122
      %p183 = scmp.lt.s32.totalorder %s15, 6
      %s184 = scalar_select %p183, %s15, 6
      %s185 = smul.addr %s184, 2
      %s186 = smul.addr %s185, 8
      %s187 = scalar_lea.vmem %s4, %s186
      %p188 = scmp.lt.s32.totalorder %s15, 6
      %s189 = scalar_select %p188, %s15, 6
      %s190 = smul.addr %s189, 8
      %s191 = smul.addr %s190, 8
      %s192 = scalar_lea.vmem %s0, %s191
      %p193 = scmp.lt.s32.totalorder %s15, 6
      %s194 = scalar_select %p193, %s15, 6
      %s195 = smul.addr %s194, 2
      %s196 = smul.addr %s195, 8
      %s197 = scalar_lea.vmem %s4, %s196
      %p198 = scmp.eq.s32.totalorder %s15, 0
      // Predicated region
      $region37: #{caption_forward.3} parent=35 // pred_check
        %p199 = pneg %p198
      $region38: #{caption_forward.3} parent=35 // pred_check_branch
        %201 = sbr.rel (%p199) target = $region40
      $region39: #{caption_forward.3} parent=35 // pred_region
        %202 = vst [vmem:[#allocation2] sm:$0xff] 0.0
        %203 = vst [vmem:[#allocation2 + $0x8] sm:$0xf] 0.0
        %204 = vst [vmem:[#allocation3] sm:$0xff] 0.0
        %205 = vst [vmem:[#allocation3 + $0x8] sm:$0xf] 0.0
      $region40: #{caption_forward.3} parent=35 // pred_fallthru
        _
      %v206 = vld [vmem:[%s192] sm:$0xff]
      %v207 = vld [vmem:[%s192 + $0x8] sm:$0xff]
      %v208 = vld [vmem:[%s192 + $0x10] sm:$0xff]
      %v209 = vld [vmem:[%s192 + $0x18] sm:$0xff]
      %v210 = vld [vmem:[%s192 + $0x20] sm:$0xf]
      %v211 = vld [vmem:[%s192 + $0x28] sm:$0xf]
      %v212 = vld [vmem:[%s192 + $0x30] sm:$0xf]
      %v213 = vld [vmem:[%s192 + $0x38] sm:$0xf]
      %v214 = vld [vmem:[#allocation2] sm:$0xff]
      %v215 = vld [vmem:[#allocation2 + $0x8] sm:$0xf]
      %v216 = vld [vmem:[%s1] sm:$0xff]
      %v217 = vld [vmem:[%s1 + $0x8] sm:$0xff]
      %v218 = vld [vmem:[%s1 + $0x10] sm:$0xff]
      %v219 = vld [vmem:[%s1 + $0x18] sm:$0xff]
      %v220 = vld [vmem:[%s1 + $0x20] sm:$0xff]
      %v221 = vld [vmem:[%s1 + $0x28] sm:$0xff]
      %v222 = vld [vmem:[%s1 + $0x30] sm:$0xff]
      %v223 = vld [vmem:[%s1 + $0x38] sm:$0xff]
      %v224 = vld [vmem:[%s1 + $0x40] sm:$0xff]
      %v225 = vld [vmem:[%s1 + $0x48] sm:$0xff]
      %v226 = vld [vmem:[%s1 + $0x50] sm:$0xff]
      %v227 = vld [vmem:[%s1 + $0x58] sm:$0xff]
      %v228 = vld [vmem:[%s1 + $0x60] sm:$0xff]
      %v229 = vld [vmem:[%s1 + $0x68] sm:$0xff]
      %v230 = vld [vmem:[%s1 + $0x70] sm:$0xff]
      %v231 = vld [vmem:[%s1 + $0x78] sm:$0xff]
      %v232 = vld [vmem:[%s1 + $0x80] sm:$0xff]
      %v233 = vld [vmem:[%s1 + $0x88] sm:$0xff]
      %v234 = vld [vmem:[%s1 + $0x90] sm:$0xff]
      %v235 = vld [vmem:[%s1 + $0x98] sm:$0xff]
      %v236 = vld [vmem:[%s1 + $0xa0] sm:$0xff]
      %v237 = vld [vmem:[%s1 + $0xa8] sm:$0xff]
      %v238 = vld [vmem:[%s1 + $0xb0] sm:$0xff]
      %v239 = vld [vmem:[%s1 + $0xb8] sm:$0xff]
      %v240 = vld [vmem:[%s1 + $0xc0] sm:$0xff]
      %v241 = vld [vmem:[%s1 + $0xc8] sm:$0xff]
      %v242 = vld [vmem:[%s1 + $0xd0] sm:$0xff]
      %v243 = vld [vmem:[%s1 + $0xd8] sm:$0xff]
      %v244 = vld [vmem:[%s1 + $0xe0] sm:$0xff]
      %v245 = vld [vmem:[%s1 + $0xe8] sm:$0xff]
      %v246 = vld [vmem:[%s1 + $0xf0] sm:$0xff]
      %v247 = vld [vmem:[%s1 + $0xf8] sm:$0xff]
      %v248 = vld [vmem:[%s1 + $0x100] sm:$0xff]
      %v249 = vld [vmem:[%s1 + $0x108] sm:$0xff]
      %v250 = vld [vmem:[%s1 + $0x110] sm:$0xff]
      %v251 = vld [vmem:[%s1 + $0x118] sm:$0xff]
      %v252 = vld [vmem:[%s1 + $0x120] sm:$0xff]
      %v253 = vld [vmem:[%s1 + $0x128] sm:$0xff]
      %v254 = vld [vmem:[%s1 + $0x130] sm:$0xff]
      %v255 = vld [vmem:[%s1 + $0x138] sm:$0xff]
      %v256 = vld [vmem:[%s1 + $0x140] sm:$0xff]
      %v257 = vld [vmem:[%s1 + $0x148] sm:$0xff]
      %v258 = vld [vmem:[%s1 + $0x150] sm:$0xff]
      %v259 = vld [vmem:[%s1 + $0x158] sm:$0xff]
      %v260 = vld [vmem:[%s1 + $0x160] sm:$0xff]
      %v261 = vld [vmem:[%s1 + $0x168] sm:$0xff]
      %v262 = vld [vmem:[%s1 + $0x170] sm:$0xff]
      %v263 = vld [vmem:[%s1 + $0x178] sm:$0xff]
      %v264 = vld [vmem:[%s1 + $0x180] sm:$0xff]
      %v265 = vld [vmem:[%s1 + $0x188] sm:$0xff]
      %v266 = vld [vmem:[%s1 + $0x190] sm:$0xff]
      %v267 = vld [vmem:[%s1 + $0x198] sm:$0xff]
      %v268 = vld [vmem:[%s1 + $0x1a0] sm:$0xff]
      %v269 = vld [vmem:[%s1 + $0x1a8] sm:$0xff]
      %v270 = vld [vmem:[%s1 + $0x1b0] sm:$0xff]
      %v271 = vld [vmem:[%s1 + $0x1b8] sm:$0xff]
      %v272 = vld [vmem:[%s1 + $0x1c0] sm:$0xff]
      %v273 = vld [vmem:[%s1 + $0x1c8] sm:$0xff]
      %v274 = vld [vmem:[%s1 + $0x1d0] sm:$0xff]
      %v275 = vld [vmem:[%s1 + $0x1d8] sm:$0xff]
      %v276 = vld [vmem:[%s1 + $0x1e0] sm:$0xff]
      %v277 = vld [vmem:[%s1 + $0x1e8] sm:$0xff]
      %v278 = vld [vmem:[%s1 + $0x1f0] sm:$0xff]
      %v279 = vld [vmem:[%s1 + $0x1f8] sm:$0xff]
      %280 = vmatprep.subr.mxu0 %v217
      %281 = vmatpush1.msra.mxu0 %v216
      %282 = vmatprep.subr.mxu0 %v221
      %283 = vmatpush1.msra.mxu0 %v220
      %284 = vmatprep.subr.mxu0 %v225
      %285 = vmatpush1.msra.mxu0 %v224
      %286 = vmatprep.subr.mxu0 %v229
      %287 = vmatpush1.msra.mxu0 %v228
      %288 = vmatprep.subr.mxu0 %v233
      %289 = vmatpush1.msra.mxu0 %v232
      %290 = vmatprep.subr.mxu0 %v237
      %291 = vmatpush1.msra.mxu0 %v236
      %292 = vmatprep.subr.mxu0 %v241
      %293 = vmatpush1.msra.mxu0 %v240
      %294 = vmatprep.subr.mxu0 %v245
      %295 = vmatpush1.msra.mxu0 %v244
      %296 = vmatprep.subr.mxu0 %v249
      %297 = vmatpush1.msra.mxu0 %v248
      %298 = vmatprep.subr.mxu0 %v253
      %299 = vmatpush1.msra.mxu0 %v252
      %300 = vmatprep.subr.mxu0 %v257
      %301 = vmatpush1.msra.mxu0 %v256
      %302 = vmatprep.subr.mxu0 %v261
      %303 = vmatpush1.msra.mxu0 %v260
      %304 = vmatprep.subr.mxu0 %v265
      %305 = vmatpush1.msra.mxu0 %v264
      %306 = vmatprep.subr.mxu0 %v269
      %307 = vmatpush1.msra.mxu0 %v268
      %308 = vmatprep.subr.mxu0 %v273
      %309 = vmatpush1.msra.mxu0 %v272
      %310 = vmatprep.subr.mxu0 %v277
      %311 = vmatpush1.msra.mxu0 %v276
      %312 = vmatprep.subr.mxu0 0.0
      %313 = vmatpush1.msra.mxu0 0.0
      %314 = vmatprep.subr.mxu0 0.0
      %315 = vmatpush1.msra.mxu0 0.0
      %316 = vmatprep.subr.mxu0 0.0
      %317 = vmatpush1.msra.mxu0 0.0
      %318 = vmatprep.subr.mxu0 0.0
      %319 = vmatpush1.msra.mxu0 0.0
      %320 = vmatprep.subr.mxu0 0.0
      %321 = vmatpush1.msra.mxu0 0.0
      %322 = vmatprep.subr.mxu0 0.0
      %323 = vmatpush1.msra.mxu0 0.0
      %324 = vmatprep.subr.mxu0 0.0
      %325 = vmatpush1.msra.mxu0 0.0
      %326 = vmatprep.subr.mxu0 0.0
      %327 = vmatpush1.msra.mxu0 0.0
      %328 = vmatprep.subr.mxu0 0.0
      %329 = vmatpush1.msra.mxu0 0.0
      %330 = vmatprep.subr.mxu0 0.0
      %331 = vmatpush1.msra.mxu0 0.0
      %332 = vmatprep.subr.mxu0 0.0
      %333 = vmatpush1.msra.mxu0 0.0
      %334 = vmatprep.subr.mxu0 0.0
      %335 = vmatpush1.msra.mxu0 0.0
      %336 = vmatprep.subr.mxu0 0.0
      %337 = vmatpush1.msra.mxu0 0.0
      %338 = vmatprep.subr.mxu0 0.0
      %339 = vmatpush1.msra.mxu0 0.0
      %340 = vmatprep.subr.mxu0 0.0
      %341 = vmatpush1.msra.mxu0 0.0
      %342 = vmatprep.subr.mxu0 0.0
      %343 = vmatpush1.msra.mxu0 0.0
      %344 = vmatprep.mubr.f32.mxu0 0.0
      %345 = vmatmul.mubr.f32.gmra.mrb[0].mxu0 %v214
      %v346 = vpop.f32.mrb[0].mxu0
      %v347 = vadd.f32 0.0, %v346
      %v348 = vpop.f32.mrb[0].mxu0
      %v349 = vadd.f32 0.0, %v348
      %350 = vmatprep.mubr.f32.mxu0 0.0
      %351 = vmatmul.mubr.f32.gmra.mrb[0].mxu0 %v215
      %v352 = vpop.f32.mrb[0].mxu0
      %v353 = vadd.f32 0.0, %v352
      %v354 = vpop.f32.mrb[0].mxu0
      %v355 = vadd.f32 0.0, %v354
      %356 = vdwg.mxu0
      %357 = vmatprep.subr.mxu0 %v219
      %358 = vmatpush1.msra.mxu0 %v218
      %359 = vmatprep.subr.mxu0 %v223
      %360 = vmatpush1.msra.mxu0 %v222
      %361 = vmatprep.subr.mxu0 %v227
      %362 = vmatpush1.msra.mxu0 %v226
      %363 = vmatprep.subr.mxu0 %v231
      %364 = vmatpush1.msra.mxu0 %v230
      %365 = vmatprep.subr.mxu0 %v235
      %366 = vmatpush1.msra.mxu0 %v234
      %367 = vmatprep.subr.mxu0 %v239
      %368 = vmatpush1.msra.mxu0 %v238
      %369 = vmatprep.subr.mxu0 %v243
      %370 = vmatpush1.msra.mxu0 %v242
      %371 = vmatprep.subr.mxu0 %v247
      %372 = vmatpush1.msra.mxu0 %v246
      %373 = vmatprep.subr.mxu0 %v251
      %374 = vmatpush1.msra.mxu0 %v250
      %375 = vmatprep.subr.mxu0 %v255
      %376 = vmatpush1.msra.mxu0 %v254
      %377 = vmatprep.subr.mxu0 %v259
      %378 = vmatpush1.msra.mxu0 %v258
      %379 = vmatprep.subr.mxu0 %v263
      %380 = vmatpush1.msra.mxu0 %v262
      %381 = vmatprep.subr.mxu0 %v267
      %382 = vmatpush1.msra.mxu0 %v266
      %383 = vmatprep.subr.mxu0 %v271
      %384 = vmatpush1.msra.mxu0 %v270
      %385 = vmatprep.subr.mxu0 %v275
      %386 = vmatpush1.msra.mxu0 %v274
      %387 = vmatprep.subr.mxu0 %v279
      %388 = vmatpush1.msra.mxu0 %v278
      %389 = vmatprep.subr.mxu0 0.0
      %390 = vmatpush1.msra.mxu0 0.0
      %391 = vmatprep.subr.mxu0 0.0
      %392 = vmatpush1.msra.mxu0 0.0
      %393 = vmatprep.subr.mxu0 0.0
      %394 = vmatpush1.msra.mxu0 0.0
      %395 = vmatprep.subr.mxu0 0.0
      %396 = vmatpush1.msra.mxu0 0.0
      %397 = vmatprep.subr.mxu0 0.0
      %398 = vmatpush1.msra.mxu0 0.0
      %399 = vmatprep.subr.mxu0 0.0
      %400 = vmatpush1.msra.mxu0 0.0
      %401 = vmatprep.subr.mxu0 0.0
      %402 = vmatpush1.msra.mxu0 0.0
      %403 = vmatprep.subr.mxu0 0.0
      %404 = vmatpush1.msra.mxu0 0.0
      %405 = vmatprep.subr.mxu0 0.0
      %406 = vmatpush1.msra.mxu0 0.0
      %407 = vmatprep.subr.mxu0 0.0
      %408 = vmatpush1.msra.mxu0 0.0
      %409 = vmatprep.subr.mxu0 0.0
      %410 = vmatpush1.msra.mxu0 0.0
      %411 = vmatprep.subr.mxu0 0.0
      %412 = vmatpush1.msra.mxu0 0.0
      %413 = vmatprep.subr.mxu0 0.0
      %414 = vmatpush1.msra.mxu0 0.0
      %415 = vmatprep.subr.mxu0 0.0
      %416 = vmatpush1.msra.mxu0 0.0
      %417 = vmatprep.subr.mxu0 0.0
      %418 = vmatpush1.msra.mxu0 0.0
      %419 = vmatprep.subr.mxu0 0.0
      %420 = vmatpush1.msra.mxu0 0.0
      %421 = vmatprep.mubr.f32.mxu0 0.0
      %422 = vmatmul.mubr.f32.gmra.mrb[0].mxu0 %v214
      %v423 = vpop.f32.mrb[0].mxu0
      %v424 = vadd.f32 0.0, %v423
      %v425 = vpop.f32.mrb[0].mxu0
      %v426 = vadd.f32 0.0, %v425
      %427 = vmatprep.mubr.f32.mxu0 0.0
      %428 = vmatmul.mubr.f32.gmra.mrb[0].mxu0 %v215
      %v429 = vpop.f32.mrb[0].mxu0
      %v430 = vadd.f32 0.0, %v429
      %v431 = vpop.f32.mrb[0].mxu0
      %v432 = vadd.f32 0.0, %v431
      %433 = vdwg.mxu0
      %v434 = vadd.f32 %v206, %v347
      %v435 = vadd.f32 %v207, %v349
      %v436 = vadd.f32 %v208, %v424
      %v437 = vadd.f32 %v209, %v426
      %v438 = vadd.f32 %v210, %v353
      %v439 = vadd.f32 %v211, %v355
      %v440 = vadd.f32 %v212, %v430
      %v441 = vadd.f32 %v213, %v432
      %v442 = vmul.f32 %v434, 0.5
      %v443 = vmul.f32 %v438, 0.5
      %v444 = vtanh.pop %v442
      %v445 = vtanh.pop %v443
      %v446 = vadd.f32 %v444, 1.0
      %v447 = vadd.f32 %v445, 1.0
      %v448 = vmul.f32 %v446, 0.5
      %v449 = vmul.f32 %v447, 0.5
      %v450 = vmul.f32 %v435, 0.5
      %v451 = vmul.f32 %v439, 0.5
      %v452 = vtanh.pop %v450
      %v453 = vtanh.pop %v451
      %v454 = vadd.f32 %v452, 1.0
      %v455 = vadd.f32 %v453, 1.0
      %v456 = vmul.f32 %v454, 0.5
      %v457 = vmul.f32 %v455, 0.5
      %v458 = vtanh.pop %v436
      %v459 = vtanh.pop %v440
      %v460 = vmul.f32 %v437, 0.5
      %v461 = vmul.f32 %v441, 0.5
      %v462 = vtanh.pop %v460
      %v463 = vtanh.pop %v461
      %v464 = vadd.f32 %v462, 1.0
      %v465 = vadd.f32 %v463, 1.0
      %v466 = vmul.f32 %v464, 0.5
      %v467 = vmul.f32 %v465, 0.5
      %v468 = vld [vmem:[#allocation3] sm:$0xff]
      %v469 = vld [vmem:[#allocation3 + $0x8] sm:$0xf]
      %v470 = vmul.f32 %v456, %v468
      %v471 = vmul.f32 %v457, %v469
      %v472 = vmul.f32 %v448, %v458
      %v473 = vmul.f32 %v449, %v459
      %v474 = vadd.f32 %v470, %v472
      %v475 = vadd.f32 %v471, %v473
      %v476 = vtanh.pop %v474
      %v477 = vtanh.pop %v475
      %v478 = vmul.f32 %v466, %v476
      %v479 = vmul.f32 %v467, %v477
      %480 = vst [vmem:[#allocation3] sm:$0xff] %v474
      %481 = vst [vmem:[#allocation3 + $0x8] sm:$0xf] %v475
      %482 = vst [vmem:[#allocation2] sm:$0xff] %v478
      %483 = vst [vmem:[#allocation2 + $0x8] sm:$0xf] %v479
      %v484 = vld [vmem:[%s2] sm:$0xff]
      %v485 = vld [vmem:[%s2 + $0x8] sm:$0xff]
      %v486 = vld [vmem:[%s2 + $0x10] sm:$0xff]
      %v487 = vld [vmem:[%s2 + $0x18] sm:$0xff]
      %v488 = vld [vmem:[%s2 + $0x20] sm:$0xff]
      %v489 = vld [vmem:[%s2 + $0x28] sm:$0xff]
      %v490 = vld [vmem:[%s2 + $0x30] sm:$0xff]
      %v491 = vld [vmem:[%s2 + $0x38] sm:$0xff]
      %v492 = vld [vmem:[%s2 + $0x40] sm:$0xff]
      %v493 = vld [vmem:[%s2 + $0x48] sm:$0xff]
      %v494 = vld [vmem:[%s2 + $0x50] sm:$0xff]
      %v495 = vld [vmem:[%s2 + $0x58] sm:$0xff]
      %v496 = vld [vmem:[%s2 + $0x60] sm:$0xff]
      %v497 = vld [vmem:[%s2 + $0x68] sm:$0xff]
      %v498 = vld [vmem:[%s2 + $0x70] sm:$0xff]
      %v499 = vld [vmem:[%s2 + $0x78] sm:$0xff]
      %v500 = vld [vmem:[%s3] sm:$0x1]
      %v502 = vlaneseq
      %v503 = vshrl.u32 %v502, 7
      %v504 = vsub.s32 0, %v503
      %v505 = vrot.slane %v500, %v504
      %507 = vmatprep.subr.mxu0 0.0
      %508 = vmatpush1.msra.mxu0 %v484
      %509 = vmatprep.subr.mxu0 0.0
      %510 = vmatpush1.msra.mxu0 %v485
      %511 = vmatprep.subr.mxu0 0.0
      %512 = vmatpush1.msra.mxu0 %v486
      %513 = vmatprep.subr.mxu0 0.0
      %514 = vmatpush1.msra.mxu0 %v487
      %515 = vmatprep.subr.mxu0 0.0
      %516 = vmatpush1.msra.mxu0 %v488
      %517 = vmatprep.subr.mxu0 0.0
      %518 = vmatpush1.msra.mxu0 %v489
      %519 = vmatprep.subr.mxu0 0.0
      %520 = vmatpush1.msra.mxu0 %v490
      %521 = vmatprep.subr.mxu0 0.0
      %522 = vmatpush1.msra.mxu0 %v491
      %523 = vmatprep.subr.mxu0 0.0
      %524 = vmatpush1.msra.mxu0 %v492
      %525 = vmatprep.subr.mxu0 0.0
      %526 = vmatpush1.msra.mxu0 %v493
      %527 = vmatprep.subr.mxu0 0.0
      %528 = vmatpush1.msra.mxu0 %v494
      %529 = vmatprep.subr.mxu0 0.0
      %530 = vmatpush1.msra.mxu0 %v495
      %531 = vmatprep.subr.mxu0 0.0
      %532 = vmatpush1.msra.mxu0 %v496
      %533 = vmatprep.subr.mxu0 0.0
      %534 = vmatpush1.msra.mxu0 %v497
      %535 = vmatprep.subr.mxu0 0.0
      %536 = vmatpush1.msra.mxu0 %v498
      %537 = vmatprep.subr.mxu0 0.0
      %538 = vmatpush1.msra.mxu0 %v499
      %539 = vmatprep.subr.mxu0 0.0
      %540 = vmatpush1.msra.mxu0 0.0
      %541 = vmatprep.subr.mxu0 0.0
      %542 = vmatpush1.msra.mxu0 0.0
      %543 = vmatprep.subr.mxu0 0.0
      %544 = vmatpush1.msra.mxu0 0.0
      %545 = vmatprep.subr.mxu0 0.0
      %546 = vmatpush1.msra.mxu0 0.0
      %547 = vmatprep.subr.mxu0 0.0
      %548 = vmatpush1.msra.mxu0 0.0
      %549 = vmatprep.subr.mxu0 0.0
      %550 = vmatpush1.msra.mxu0 0.0
      %551 = vmatprep.subr.mxu0 0.0
      %552 = vmatpush1.msra.mxu0 0.0
      %553 = vmatprep.subr.mxu0 0.0
      %554 = vmatpush1.msra.mxu0 0.0
      %555 = vmatprep.subr.mxu0 0.0
      %556 = vmatpush1.msra.mxu0 0.0
      %557 = vmatprep.subr.mxu0 0.0
      %558 = vmatpush1.msra.mxu0 0.0
      %559 = vmatprep.subr.mxu0 0.0
      %560 = vmatpush1.msra.mxu0 0.0
      %561 = vmatprep.subr.mxu0 0.0
      %562 = vmatpush1.msra.mxu0 0.0
      %563 = vmatprep.subr.mxu0 0.0
      %564 = vmatpush1.msra.mxu0 0.0
      %565 = vmatprep.subr.mxu0 0.0
      %566 = vmatpush1.msra.mxu0 0.0
      %567 = vmatprep.subr.mxu0 0.0
      %568 = vmatpush1.msra.mxu0 0.0
      %569 = vmatprep.subr.mxu0 0.0
      %570 = vmatpush1.msra.mxu0 0.0
      %571 = vmatprep.mubr.f32.mxu0 0.0
      %572 = vmatmul.mubr.f32.gmra.mrb[0].mxu0 %v478
      %v573 = vpop.f32.mrb[0].mxu0
      %v574 = vadd.f32 %v505, %v573
      %v575 = vpop.f32.mrb[0].mxu0
      %576 = vmatprep.mubr.f32.mxu0 0.0
      %577 = vmatmul.mubr.f32.gmra.mrb[0].mxu0 %v479
      %v578 = vpop.f32.mrb[0].mxu0
      %v579 = vadd.f32 %v505, %v578
      %v580 = vpop.f32.mrb[0].mxu0
      %581 = vdwg.mxu0
      %582 = vmax.xlane.f32.xlu0 %v574
      %v583 = vpop.xlane.xlu0 %582
      %vm584 = vcmask 1043456
      %v585 = vsel %vm584, %v579, -inf
      %586 = vmax.xlane.f32.xlu0 %v585
      %v587 = vpop.xlane.xlu0 %586
      %v588 = vsub.f32 %v574, %v583
      %v589 = vsub.f32 %v579, %v587
      %v590 = vmul.f32 %v588, 1.442695
      %v591 = vpow.pop %v590
      %v592 = vmul.f32 %v589, 1.442695
      %v593 = vpow.pop %v592
      %594 = vadd.xlane.f32.xlu0 %v591
      %v595 = vpop.xlane.xlu0 %594
      %v596 = vsel %vm584, %v593, 0.0
      %597 = vadd.xlane.f32.xlu0 %v596
      %v598 = vpop.xlane.xlu0 %597
      %v599 = vlog2.pop %v595
      %v600 = vmul.f32 %v599, 0.6931472
      %v601 = vlog2.pop %v598
      %v602 = vmul.f32 %v601, 0.6931472
      %v603 = vadd.f32 %v600, %v583
      %v604 = vadd.f32 %v602, %v587
      %v605 = vsub.f32 %v574, %v603
      %v606 = vsub.f32 %v579, %v604
      %607 = vst [vmem:[%s197] sm:$0xff] %v605
      %608 = vst [vmem:[%s197 + $0x8] sm:$0xf] %v606
      %p609 = scmp.lt.s32.totalorder %s15, 6
      %s610 = scalar_select %p609, %s15, 6
      %s611 = smul.addr %s610, 2
      %s612 = smul.addr %s611, 8
      %s613 = scalar_lea.vmem %s4, %s612
      // Predicated region
      $region41: #{caption_forward.3} parent=35 // pred_check
        %p614 = pneg %p122
      $region42: #{caption_forward.3} parent=35 // pred_check_branch
        %616 = sbr.rel (%p614) target = $region44
      $region43: #{caption_forward.3} parent=35 // pred_region
        _
      $region44: #{caption_forward.3} parent=35 // pred_fallthru
        _
    $region36: #{caption_forward.3} parent=5 // pred_fallthru
      _
    %p617 = scmp.le.s32.totalorder 2, %s10
    // Predicated region
    $region45: #{caption_forward.3} parent=5 // pred_check
      %p618 = pneg %p617
    $region46: #{caption_forward.3} parent=5 // pred_check_branch
      %620 = sbr.rel (%p618) target = $region48
    $region47: #{caption_forward.3} parent=5 // pred_region
      %s621 = ssub.s32 %s10, 2
      // Predicated region
      $region49: #{caption_forward.3} parent=47 // pred_check
        %p622 = pneg %p128
      $region50: #{caption_forward.3} parent=47 // pred_check_branch
        %624 = sbr.rel (%p622) target = $region52
      $region51: #{caption_forward.3} parent=47 // pred_region
        %p625 = scmp.lt.s32.totalorder %s16, 6
        %s626 = scalar_select %p625, %s16, 6
        %s627 = smul.addr %s626, 2
        %s628 = smul.addr %s627, 8
        %s629 = scalar_lea.vmem %s4, %s628
      $region52: #{caption_forward.3} parent=47 // pred_fallthru
        _
    $region48: #{caption_forward.3} parent=5 // pred_fallthru
      _
  $region6: #{caption_forward.3} parent=0 // loop_footer
    %s14 = sadd.s32 1, %s10
  $region7: #{caption_forward.3} parent=0 // loop_footer_branch
    %9 = sbr.rel target = $region3
  $region8: #{caption_forward.3} parent=0 // loop_exit
    _

</llo_original>
